<compile_context>
chip_gen: v5e
topology: v5e:2x2
jax: 0.10.0
libtpu: 0.0.40
codegen_flags: <defaults>
</compile_context>

<pallas_src>
import jax
import jax.numpy as jnp
from jax.experimental import pallas as pl
from jax.experimental.pallas import tpu as pltpu


def _round_up(x, m):
    return (x + m - 1) // m * m


# PyTorch gate-stack order is (i, f, g, o); kernel layout is (i, f, o, g) so the
# three sigmoid gates are contiguous.
_GATE_PERM = (0, 1, 3, 2)


def lstm_baseline_kernel(x_ref, wih_ref, b_ref, whh_ref, wp_ref, bp_ref,
                         out_ref, gx_scr):
    """x_ref: (S*Bp, E) bf16; wih_ref: (E, 4*Hp) bf16; b_ref: (1, 4*Hp) f32;
    whh_ref: (Hp, 4*Hp) f32; wp_ref: (1, Hp) f32; bp_ref: (1, 1) f32;
    out_ref: (Bp, 1) f32; gx_scr: (S*Bp, 4*Hp) f32 VMEM scratch."""
    Hp = whh_ref.shape[0]
    Bp = out_ref.shape[0]
    S = x_ref.shape[0] // Bp

    # ---- input projection hoisted out of the recurrence: one big MXU GEMM ----
    # gates_x = x @ W_ih^T + (b_ih + b_hh) for all timesteps at once.
    # bf16 operands, f32 accumulation (bf16-native MXU on v5e/v6e/v7x).
    gx_scr[...] = (jnp.dot(x_ref[...], wih_ref[...],
                           preferred_element_type=jnp.float32)
                   + b_ref[...])

    # ---- serial recurrence: only h @ W_hh^T + gates_x[t] per step ----
    # Padded-lane invariant: columns [H, Hp) of every gate block are zero in
    # W_ih, W_hh and the bias, and h0 = c0 = 0, so padded lanes of h/c stay
    # exactly 0 for the whole recurrence (f=0.5 decays c_pad=0; g=tanh(0)=0).
    # Do NOT change the zero initial state or drop the weight/bias zero-padding
    # without revisiting this.
    def step(t, carry):
        h, c = carry
        row = pl.multiple_of(t * Bp, Bp)
        # Recurrent matmul kept in f32 for parity with the f32 reference and to
        # avoid bf16 error compounding over S steps on the serial path.
        gates = gx_scr[pl.ds(row, Bp), :] + jnp.dot(
            h, whh_ref[...], preferred_element_type=jnp.float32)
        # Gate layout (i, f, o, g): one wide sigmoid + one tanh per step.
        # Hp is a multiple of 128 -> every slice is 128-lane aligned.
        sfo = jax.nn.sigmoid(gates[:, :3 * Hp])
        g_g = jnp.tanh(gates[:, 3 * Hp:4 * Hp])
        i_g = sfo[:, 0 * Hp:1 * Hp]
        f_g = sfo[:, 1 * Hp:2 * Hp]
        o_g = sfo[:, 2 * Hp:3 * Hp]
        c = f_g * c + i_g * g_g
        h = o_g * jnp.tanh(c)
        return h, c

    h0 = jnp.zeros((Bp, Hp), jnp.float32)
    # Fixed partial unroll: scheduler visibility without a full-S unroll's
    # vreg-pressure cliff (64 vregs) or the fully-rolled-loop penalty.
    h_last, _ = jax.lax.fori_loop(0, S, step, (h0, h0), unroll=min(S, 8))

    # ---- predictor Linear(H, 1): VPU multiply + lane reduction (no N=1 MXU) ----
    out_ref[...] = (jnp.sum(h_last * wp_ref[...], axis=-1, keepdims=True)
                    + bp_ref[...])


def _gate_cols_padded_t(w, H, Hp):
    """PyTorch gate-stacked weight (4H, K), order (i,f,g,o) -> (K, 4*Hp) with
    gate order (i,f,o,g); gate k occupies the 128-lane-aligned column block
    [k*Hp, k*Hp + H), zero-padded elsewhere."""
    K = w.shape[1]
    w4 = w.reshape(4, H, K)[jnp.asarray(_GATE_PERM)]
    w4p = jnp.zeros((4, Hp, K), w.dtype).at[:, :H, :].set(w4)
    return w4p.reshape(4 * Hp, K).T


def lstm_baseline_forward(seq, params):
    """seq: (seq_len, batch) int32 token ids. Returns (batch, 1) float32."""
    emb_table = params["embedding"]           # (V, E)
    w_ih = params["w_ih"]                     # (4H, E)
    w_hh = params["w_hh"]                     # (4H, H)
    bias = params["b_ih"] + params["b_hh"]    # (4H,)
    w_pred = params["w_pred"]                 # (1, H)
    b_pred = params["b_pred"]                 # (1,)

    S, B = seq.shape
    E = emb_table.shape[1]
    H = w_hh.shape[1]
    Hp = _round_up(H, 128)                    # lane-aligned gate blocks
    Bp = _round_up(max(B, 8), 8)              # full sublane tile

    # Glue: embedding gather (data-dependent), pad batch, flatten time*batch.
    emb = jnp.take(emb_table, seq, axis=0)                     # (S, B, E)
    emb = jnp.pad(emb, ((0, 0), (0, Bp - B), (0, 0)))          # (S, Bp, E)
    x2d = emb.reshape(S * Bp, E).astype(jnp.bfloat16)          # bf16 MXU operand

    # Padded / transposed / per-gate lane-aligned weights, order (i, f, o, g).
    wih_t = _gate_cols_padded_t(w_ih, H, Hp).astype(jnp.bfloat16)  # (E, 4*Hp)
    whh_t = _gate_cols_padded_t(w_hh, H, Hp).astype(jnp.float32)   # (H, 4*Hp)
    whh_t = jnp.pad(whh_t, ((0, Hp - H), (0, 0)))                  # (Hp, 4*Hp)
    b4 = bias.reshape(4, H)[jnp.asarray(_GATE_PERM)]
    b_pad = jnp.zeros((4, Hp), jnp.float32).at[:, :H].set(b4).reshape(1, 4 * Hp)
    wp_pad = jnp.pad(w_pred.astype(jnp.float32), ((0, 0), (0, Hp - H)))  # (1, Hp)
    bp = b_pred.reshape(1, 1).astype(jnp.float32)                        # (1, 1)

    # Explicit VMEM budget: all inputs + the full-sequence gates scratch are
    # resident simultaneously (single invocation, no pipeline double-buffers).
    vmem_bytes = (
        x2d.size * 2 + wih_t.size * 2            # bf16 inputs
        + (b_pad.size + whh_t.size + wp_pad.size + bp.size + Bp) * 4
        + S * Bp * 4 * Hp * 4                    # gates_x scratch (f32)
    )
    vmem_limit = min(100 << 20, 2 * int(vmem_bytes) + (2 << 20))

    out_pad = pl.pallas_call(
        lstm_baseline_kernel,
        out_shape=jax.ShapeDtypeStruct((Bp, 1), jnp.float32),
        in_specs=[pl.BlockSpec(memory_space=pltpu.MemorySpace.VMEM)] * 6,
        out_specs=pl.BlockSpec(memory_space=pltpu.MemorySpace.VMEM),
        scratch_shapes=[pltpu.VMEM((S * Bp, 4 * Hp), jnp.float32)],  # gates_x
        compiler_params=pltpu.CompilerParams(vmem_limit_bytes=vmem_limit),
    )(x2d, wih_t, b_pad, whh_t, wp_pad, bp)

    return out_pad[:B]


def make_params(key, vocab_size, emb_dim, hidden_dim):
    """Parameters in PyTorch layout (nn.Embedding / nn.LSTM / nn.Linear)."""
    ks = jax.random.split(key, 7)
    s = 0.1
    return {
        "embedding": s * jax.random.normal(ks[0], (vocab_size, emb_dim), jnp.float32),
        "w_ih": s * jax.random.normal(ks[1], (4 * hidden_dim, emb_dim), jnp.float32),
        "w_hh": s * jax.random.normal(ks[2], (4 * hidden_dim, hidden_dim), jnp.float32),
        "b_ih": s * jax.random.normal(ks[3], (4 * hidden_dim,), jnp.float32),
        "b_hh": s * jax.random.normal(ks[4], (4 * hidden_dim,), jnp.float32),
        "w_pred": s * jax.random.normal(ks[5], (1, hidden_dim), jnp.float32),
        "b_pred": s * jax.random.normal(ks[6], (1,), jnp.float32),
    }


def reference_forward(seq, params, *, bf16_input_proj=False):
    """Pure-JAX reference (PyTorch gate order). With bf16_input_proj=True the
    input projection uses bf16 operands + f32 accumulation, mirroring the
    kernel's MXU numerics for a tight correctness check."""
    emb = jnp.take(params["embedding"], seq, axis=0)  # (S, B, E)
    B = emb.shape[1]
    H = params["w_hh"].shape[1]
    w_ih_t = params["w_ih"].T
    w_hh_t = params["w_hh"].T
    b = (params["b_ih"] + params["b_hh"])[None, :]

    if bf16_input_proj:
        gx = jnp.einsum("sbe,eh->sbh", emb.astype(jnp.bfloat16),
                        w_ih_t.astype(jnp.bfloat16),
                        preferred_element_type=jnp.float32) + b
    else:
        gx = jnp.einsum("sbe,eh->sbh", emb, w_ih_t,
                        preferred_element_type=jnp.float32) + b

    def step(carry, gx_t):
        h, c = carry
        gates = gx_t + h @ w_hh_t
        i_g = jax.nn.sigmoid(gates[:, 0 * H:1 * H])
        f_g = jax.nn.sigmoid(gates[:, 1 * H:2 * H])
        g_g = jnp.tanh(gates[:, 2 * H:3 * H])
        o_g = jax.nn.sigmoid(gates[:, 3 * H:4 * H])
        c = f_g * c + i_g * g_g
        h = o_g * jnp.tanh(c)
        return (h, c), None

    h0 = jnp.zeros((B, H), jnp.float32)
    (h, _), _ = jax.lax.scan(step, (h0, h0), gx)
    return h @ params["w_pred"].T + params["b_pred"][None, :]


if __name__ == "__main__":
    # Small shapes consistent with the module (num_linear=1: no hidden Linears).
    VOCAB, EMB, HID = 100, 64, 32
    SEQ_LEN, BATCH = 8, 4

    key = jax.random.PRNGKey(0)
    k_param, k_seq = jax.random.split(key)
    params = make_params(k_param, VOCAB, EMB, HID)
    seq = jax.random.randint(k_seq, (SEQ_LEN, BATCH), 0, VOCAB, dtype=jnp.int32)

    preds = jax.block_until_ready(lstm_baseline_forward(seq, params))
    assert preds.shape == (BATCH, 1), preds.shape

    # Tight check vs a reference with matched (bf16 input-projection) numerics.
    ref_match = reference_forward(seq, params, bf16_input_proj=True)
    assert jnp.allclose(preds, ref_match, atol=1e-3, rtol=1e-3), (preds, ref_match)

    # Looser check vs the pure-f32 PyTorch-semantics reference: the bf16 MXU
    # operands on the hoisted input projection introduce ~1e-3-level deltas.
    ref_f32 = reference_forward(seq, params, bf16_input_proj=False)
    assert jnp.allclose(preds, ref_f32, atol=5e-3, rtol=1e-2), (preds, ref_f32)

    print("KERNEL_OK")
</pallas_src>

<mosaic_0001>
module attributes {stable_mosaic.version = 11 : i64} {
  func.func @lstm_baseline_kernel(%arg0: memref<64x64xbf16, #tpu.memory_space<vmem>>, %arg1: memref<64x512xbf16, #tpu.memory_space<vmem>>, %arg2: memref<1x512xf32, #tpu.memory_space<vmem>>, %arg3: memref<128x512xf32, #tpu.memory_space<vmem>>, %arg4: memref<1x128xf32, #tpu.memory_space<vmem>>, %arg5: memref<1x1xf32, #tpu.memory_space<vmem>>, %arg6: memref<8x1xf32, #tpu.memory_space<vmem>>, %arg7: memref<64x512xf32, #tpu.memory_space<vmem>>) attributes {dimension_semantics = [], scalar_prefetch = 0 : i64, scratch_operands = 1 : i64, tpu.core_type = #tpu.core_type<tc>} {
    %c0 = arith.constant 0 : index
    %c0_0 = arith.constant 0 : index
    %0 = vector.load %arg0[%c0, %c0_0] : memref<64x64xbf16, #tpu.memory_space<vmem>>, vector<64x64xbf16>
    %c0_1 = arith.constant 0 : index
    %c0_2 = arith.constant 0 : index
    %1 = vector.load %arg1[%c0_1, %c0_2] : memref<64x512xbf16, #tpu.memory_space<vmem>>, vector<64x512xbf16>
    %cst = arith.constant dense<0.000000e+00> : vector<64x512xf32>
    %2 = tpu.matmul %0, %1, %cst {dimension_numbers = #tpu.dot_dimension_numbers<[1], [0], [0], [1], [0, 0, 1, 1], [], []>} : vector<64x64xbf16>, vector<64x512xbf16>, vector<64x512xf32> -> vector<64x512xf32>
    %c0_3 = arith.constant 0 : index
    %c0_4 = arith.constant 0 : index
    %3 = vector.load %arg2[%c0_3, %c0_4] : memref<1x512xf32, #tpu.memory_space<vmem>>, vector<1x512xf32>
    %4 = vector.broadcast %3 : vector<1x512xf32> to vector<64x512xf32>
    %5 = arith.addf %2, %4 : vector<64x512xf32>
    %c0_5 = arith.constant 0 : index
    %c0_6 = arith.constant 0 : index
    %6 = vector.load %arg7[%c0_5, %c0_6] : memref<64x512xf32, #tpu.memory_space<vmem>>, vector<64x512xf32>
    tpu.vector_store %arg7[%c0_5, %c0_6], %5 {strides = array<i32>} : memref<64x512xf32, #tpu.memory_space<vmem>>, vector<64x512xf32>,
    %cst_7 = arith.constant 0.000000e+00 : f32
    %7 = vector.broadcast %cst_7 : f32 to vector<8x128xf32>
    %c0_i32 = arith.constant 0 : i32
    %c8_i32 = arith.constant 8 : i32
    %8 = arith.muli %c0_i32, %c8_i32 : i32
    %9 = tpu.assume_multiple %8, 8 : i32
    %10 = arith.index_cast %9 : i32 to index
    %c0_8 = arith.constant 0 : index
    %11 = vector.load %arg7[%10, %c0_8] : memref<64x512xf32, #tpu.memory_space<vmem>>, vector<8x512xf32>
    %c0_9 = arith.constant 0 : index
    %c0_10 = arith.constant 0 : index
    %12 = vector.load %arg3[%c0_9, %c0_10] : memref<128x512xf32, #tpu.memory_space<vmem>>, vector<128x512xf32>
    %cst_11 = arith.constant dense<0.000000e+00> : vector<8x512xf32>
    %13 = tpu.matmul %7, %12, %cst_11 {dimension_numbers = #tpu.dot_dimension_numbers<[1], [0], [0], [1], [0, 0, 1, 1], [], []>} : vector<8x128xf32>, vector<128x512xf32>, vector<8x512xf32> -> vector<8x512xf32>
    %14 = arith.addf %11, %13 : vector<8x512xf32>
    %15 = vector.extract_strided_slice %14 {offsets = [0, 0], sizes = [8, 384], strides = [1, 1]} : vector<8x512xf32> to vector<8x384xf32>
    %16 = arith.negf %15 : vector<8x384xf32>
    %17 = math.exp %16 : vector<8x384xf32>
    %cst_12 = arith.constant 1.000000e+00 : f32
    %18 = vector.broadcast %cst_12 : f32 to vector<8x384xf32>
    %19 = arith.addf %18, %17 : vector<8x384xf32>
    %20 = arith.divf %18, %19 : vector<8x384xf32>
    %21 = vector.extract_strided_slice %14 {offsets = [0, 384], sizes = [8, 128], strides = [1, 1]} : vector<8x512xf32> to vector<8x128xf32>
    %22 = math.tanh %21 : vector<8x128xf32>
    %23 = vector.extract_strided_slice %20 {offsets = [0, 0], sizes = [8, 128], strides = [1, 1]} : vector<8x384xf32> to vector<8x128xf32>
    %24 = vector.extract_strided_slice %20 {offsets = [0, 128], sizes = [8, 128], strides = [1, 1]} : vector<8x384xf32> to vector<8x128xf32>
    %25 = vector.extract_strided_slice %20 {offsets = [0, 256], sizes = [8, 128], strides = [1, 1]} : vector<8x384xf32> to vector<8x128xf32>
    %26 = arith.mulf %24, %7 : vector<8x128xf32>
    %27 = arith.mulf %23, %22 : vector<8x128xf32>
    %28 = arith.addf %26, %27 : vector<8x128xf32>
    %29 = math.tanh %28 : vector<8x128xf32>
    %30 = arith.mulf %25, %29 : vector<8x128xf32>
    %c1_i32 = arith.constant 1 : i32
    %c8_i32_13 = arith.constant 8 : i32
    %31 = arith.muli %c1_i32, %c8_i32_13 : i32
    %32 = tpu.assume_multiple %31, 8 : i32
    %33 = arith.index_cast %32 : i32 to index
    %c0_14 = arith.constant 0 : index
    %34 = vector.load %arg7[%33, %c0_14] : memref<64x512xf32, #tpu.memory_space<vmem>>, vector<8x512xf32>
    %c0_15 = arith.constant 0 : index
    %c0_16 = arith.constant 0 : index
    %35 = vector.load %arg3[%c0_15, %c0_16] : memref<128x512xf32, #tpu.memory_space<vmem>>, vector<128x512xf32>
    %cst_17 = arith.constant dense<0.000000e+00> : vector<8x512xf32>
    %36 = tpu.matmul %30, %35, %cst_17 {dimension_numbers = #tpu.dot_dimension_numbers<[1], [0], [0], [1], [0, 0, 1, 1], [], []>} : vector<8x128xf32>, vector<128x512xf32>, vector<8x512xf32> -> vector<8x512xf32>
    %37 = arith.addf %34, %36 : vector<8x512xf32>
    %38 = vector.extract_strided_slice %37 {offsets = [0, 0], sizes = [8, 384], strides = [1, 1]} : vector<8x512xf32> to vector<8x384xf32>
    %39 = arith.negf %38 : vector<8x384xf32>
    %40 = math.exp %39 : vector<8x384xf32>
    %cst_18 = arith.constant 1.000000e+00 : f32
    %41 = vector.broadcast %cst_18 : f32 to vector<8x384xf32>
    %42 = arith.addf %41, %40 : vector<8x384xf32>
    %43 = arith.divf %41, %42 : vector<8x384xf32>
    %44 = vector.extract_strided_slice %37 {offsets = [0, 384], sizes = [8, 128], strides = [1, 1]} : vector<8x512xf32> to vector<8x128xf32>
    %45 = math.tanh %44 : vector<8x128xf32>
    %46 = vector.extract_strided_slice %43 {offsets = [0, 0], sizes = [8, 128], strides = [1, 1]} : vector<8x384xf32> to vector<8x128xf32>
    %47 = vector.extract_strided_slice %43 {offsets = [0, 128], sizes = [8, 128], strides = [1, 1]} : vector<8x384xf32> to vector<8x128xf32>
    %48 = vector.extract_strided_slice %43 {offsets = [0, 256], sizes = [8, 128], strides = [1, 1]} : vector<8x384xf32> to vector<8x128xf32>
    %49 = arith.mulf %47, %28 : vector<8x128xf32>
    %50 = arith.mulf %46, %45 : vector<8x128xf32>
    %51 = arith.addf %49, %50 : vector<8x128xf32>
    %52 = math.tanh %51 : vector<8x128xf32>
    %53 = arith.mulf %48, %52 : vector<8x128xf32>
    %c2_i32 = arith.constant 2 : i32
    %c8_i32_19 = arith.constant 8 : i32
    %54 = arith.muli %c2_i32, %c8_i32_19 : i32
    %55 = tpu.assume_multiple %54, 8 : i32
    %56 = arith.index_cast %55 : i32 to index
    %c0_20 = arith.constant 0 : index
    %57 = vector.load %arg7[%56, %c0_20] : memref<64x512xf32, #tpu.memory_space<vmem>>, vector<8x512xf32>
    %c0_21 = arith.constant 0 : index
    %c0_22 = arith.constant 0 : index
    %58 = vector.load %arg3[%c0_21, %c0_22] : memref<128x512xf32, #tpu.memory_space<vmem>>, vector<128x512xf32>
    %cst_23 = arith.constant dense<0.000000e+00> : vector<8x512xf32>
    %59 = tpu.matmul %53, %58, %cst_23 {dimension_numbers = #tpu.dot_dimension_numbers<[1], [0], [0], [1], [0, 0, 1, 1], [], []>} : vector<8x128xf32>, vector<128x512xf32>, vector<8x512xf32> -> vector<8x512xf32>
    %60 = arith.addf %57, %59 : vector<8x512xf32>
    %61 = vector.extract_strided_slice %60 {offsets = [0, 0], sizes = [8, 384], strides = [1, 1]} : vector<8x512xf32> to vector<8x384xf32>
    %62 = arith.negf %61 : vector<8x384xf32>
    %63 = math.exp %62 : vector<8x384xf32>
    %cst_24 = arith.constant 1.000000e+00 : f32
    %64 = vector.broadcast %cst_24 : f32 to vector<8x384xf32>
    %65 = arith.addf %64, %63 : vector<8x384xf32>
    %66 = arith.divf %64, %65 : vector<8x384xf32>
    %67 = vector.extract_strided_slice %60 {offsets = [0, 384], sizes = [8, 128], strides = [1, 1]} : vector<8x512xf32> to vector<8x128xf32>
    %68 = math.tanh %67 : vector<8x128xf32>
    %69 = vector.extract_strided_slice %66 {offsets = [0, 0], sizes = [8, 128], strides = [1, 1]} : vector<8x384xf32> to vector<8x128xf32>
    %70 = vector.extract_strided_slice %66 {offsets = [0, 128], sizes = [8, 128], strides = [1, 1]} : vector<8x384xf32> to vector<8x128xf32>
    %71 = vector.extract_strided_slice %66 {offsets = [0, 256], sizes = [8, 128], strides = [1, 1]} : vector<8x384xf32> to vector<8x128xf32>
    %72 = arith.mulf %70, %51 : vector<8x128xf32>
    %73 = arith.mulf %69, %68 : vector<8x128xf32>
    %74 = arith.addf %72, %73 : vector<8x128xf32>
    %75 = math.tanh %74 : vector<8x128xf32>
    %76 = arith.mulf %71, %75 : vector<8x128xf32>
    %c3_i32 = arith.constant 3 : i32
    %c8_i32_25 = arith.constant 8 : i32
    %77 = arith.muli %c3_i32, %c8_i32_25 : i32
    %78 = tpu.assume_multiple %77, 8 : i32
    %79 = arith.index_cast %78 : i32 to index
    %c0_26 = arith.constant 0 : index
    %80 = vector.load %arg7[%79, %c0_26] : memref<64x512xf32, #tpu.memory_space<vmem>>, vector<8x512xf32>
    %c0_27 = arith.constant 0 : index
    %c0_28 = arith.constant 0 : index
    %81 = vector.load %arg3[%c0_27, %c0_28] : memref<128x512xf32, #tpu.memory_space<vmem>>, vector<128x512xf32>
    %cst_29 = arith.constant dense<0.000000e+00> : vector<8x512xf32>
    %82 = tpu.matmul %76, %81, %cst_29 {dimension_numbers = #tpu.dot_dimension_numbers<[1], [0], [0], [1], [0, 0, 1, 1], [], []>} : vector<8x128xf32>, vector<128x512xf32>, vector<8x512xf32> -> vector<8x512xf32>
    %83 = arith.addf %80, %82 : vector<8x512xf32>
    %84 = vector.extract_strided_slice %83 {offsets = [0, 0], sizes = [8, 384], strides = [1, 1]} : vector<8x512xf32> to vector<8x384xf32>
    %85 = arith.negf %84 : vector<8x384xf32>
    %86 = math.exp %85 : vector<8x384xf32>
    %cst_30 = arith.constant 1.000000e+00 : f32
    %87 = vector.broadcast %cst_30 : f32 to vector<8x384xf32>
    %88 = arith.addf %87, %86 : vector<8x384xf32>
    %89 = arith.divf %87, %88 : vector<8x384xf32>
    %90 = vector.extract_strided_slice %83 {offsets = [0, 384], sizes = [8, 128], strides = [1, 1]} : vector<8x512xf32> to vector<8x128xf32>
    %91 = math.tanh %90 : vector<8x128xf32>
    %92 = vector.extract_strided_slice %89 {offsets = [0, 0], sizes = [8, 128], strides = [1, 1]} : vector<8x384xf32> to vector<8x128xf32>
    %93 = vector.extract_strided_slice %89 {offsets = [0, 128], sizes = [8, 128], strides = [1, 1]} : vector<8x384xf32> to vector<8x128xf32>
    %94 = vector.extract_strided_slice %89 {offsets = [0, 256], sizes = [8, 128], strides = [1, 1]} : vector<8x384xf32> to vector<8x128xf32>
    %95 = arith.mulf %93, %74 : vector<8x128xf32>
    %96 = arith.mulf %92, %91 : vector<8x128xf32>
    %97 = arith.addf %95, %96 : vector<8x128xf32>
    %98 = math.tanh %97 : vector<8x128xf32>
    %99 = arith.mulf %94, %98 : vector<8x128xf32>
    %c4_i32 = arith.constant 4 : i32
    %c8_i32_31 = arith.constant 8 : i32
    %100 = arith.muli %c4_i32, %c8_i32_31 : i32
    %101 = tpu.assume_multiple %100, 8 : i32
    %102 = arith.index_cast %101 : i32 to index
    %c0_32 = arith.constant 0 : index
    %103 = vector.load %arg7[%102, %c0_32] : memref<64x512xf32, #tpu.memory_space<vmem>>, vector<8x512xf32>
    %c0_33 = arith.constant 0 : index
    %c0_34 = arith.constant 0 : index
    %104 = vector.load %arg3[%c0_33, %c0_34] : memref<128x512xf32, #tpu.memory_space<vmem>>, vector<128x512xf32>
    %cst_35 = arith.constant dense<0.000000e+00> : vector<8x512xf32>
    %105 = tpu.matmul %99, %104, %cst_35 {dimension_numbers = #tpu.dot_dimension_numbers<[1], [0], [0], [1], [0, 0, 1, 1], [], []>} : vector<8x128xf32>, vector<128x512xf32>, vector<8x512xf32> -> vector<8x512xf32>
    %106 = arith.addf %103, %105 : vector<8x512xf32>
    %107 = vector.extract_strided_slice %106 {offsets = [0, 0], sizes = [8, 384], strides = [1, 1]} : vector<8x512xf32> to vector<8x384xf32>
    %108 = arith.negf %107 : vector<8x384xf32>
    %109 = math.exp %108 : vector<8x384xf32>
    %cst_36 = arith.constant 1.000000e+00 : f32
    %110 = vector.broadcast %cst_36 : f32 to vector<8x384xf32>
    %111 = arith.addf %110, %109 : vector<8x384xf32>
    %112 = arith.divf %110, %111 : vector<8x384xf32>
    %113 = vector.extract_strided_slice %106 {offsets = [0, 384], sizes = [8, 128], strides = [1, 1]} : vector<8x512xf32> to vector<8x128xf32>
    %114 = math.tanh %113 : vector<8x128xf32>
    %115 = vector.extract_strided_slice %112 {offsets = [0, 0], sizes = [8, 128], strides = [1, 1]} : vector<8x384xf32> to vector<8x128xf32>
    %116 = vector.extract_strided_slice %112 {offsets = [0, 128], sizes = [8, 128], strides = [1, 1]} : vector<8x384xf32> to vector<8x128xf32>
    %117 = vector.extract_strided_slice %112 {offsets = [0, 256], sizes = [8, 128], strides = [1, 1]} : vector<8x384xf32> to vector<8x128xf32>
    %118 = arith.mulf %116, %97 : vector<8x128xf32>
    %119 = arith.mulf %115, %114 : vector<8x128xf32>
    %120 = arith.addf %118, %119 : vector<8x128xf32>
    %121 = math.tanh %120 : vector<8x128xf32>
    %122 = arith.mulf %117, %121 : vector<8x128xf32>
    %c5_i32 = arith.constant 5 : i32
    %c8_i32_37 = arith.constant 8 : i32
    %123 = arith.muli %c5_i32, %c8_i32_37 : i32
    %124 = tpu.assume_multiple %123, 8 : i32
    %125 = arith.index_cast %124 : i32 to index
    %c0_38 = arith.constant 0 : index
    %126 = vector.load %arg7[%125, %c0_38] : memref<64x512xf32, #tpu.memory_space<vmem>>, vector<8x512xf32>
    %c0_39 = arith.constant 0 : index
    %c0_40 = arith.constant 0 : index
    %127 = vector.load %arg3[%c0_39, %c0_40] : memref<128x512xf32, #tpu.memory_space<vmem>>, vector<128x512xf32>
    %cst_41 = arith.constant dense<0.000000e+00> : vector<8x512xf32>
    %128 = tpu.matmul %122, %127, %cst_41 {dimension_numbers = #tpu.dot_dimension_numbers<[1], [0], [0], [1], [0, 0, 1, 1], [], []>} : vector<8x128xf32>, vector<128x512xf32>, vector<8x512xf32> -> vector<8x512xf32>
    %129 = arith.addf %126, %128 : vector<8x512xf32>
    %130 = vector.extract_strided_slice %129 {offsets = [0, 0], sizes = [8, 384], strides = [1, 1]} : vector<8x512xf32> to vector<8x384xf32>
    %131 = arith.negf %130 : vector<8x384xf32>
    %132 = math.exp %131 : vector<8x384xf32>
    %cst_42 = arith.constant 1.000000e+00 : f32
    %133 = vector.broadcast %cst_42 : f32 to vector<8x384xf32>
    %134 = arith.addf %133, %132 : vector<8x384xf32>
    %135 = arith.divf %133, %134 : vector<8x384xf32>
    %136 = vector.extract_strided_slice %129 {offsets = [0, 384], sizes = [8, 128], strides = [1, 1]} : vector<8x512xf32> to vector<8x128xf32>
    %137 = math.tanh %136 : vector<8x128xf32>
    %138 = vector.extract_strided_slice %135 {offsets = [0, 0], sizes = [8, 128], strides = [1, 1]} : vector<8x384xf32> to vector<8x128xf32>
    %139 = vector.extract_strided_slice %135 {offsets = [0, 128], sizes = [8, 128], strides = [1, 1]} : vector<8x384xf32> to vector<8x128xf32>
    %140 = vector.extract_strided_slice %135 {offsets = [0, 256], sizes = [8, 128], strides = [1, 1]} : vector<8x384xf32> to vector<8x128xf32>
    %141 = arith.mulf %139, %120 : vector<8x128xf32>
    %142 = arith.mulf %138, %137 : vector<8x128xf32>
    %143 = arith.addf %141, %142 : vector<8x128xf32>
    %144 = math.tanh %143 : vector<8x128xf32>
    %145 = arith.mulf %140, %144 : vector<8x128xf32>
    %c6_i32 = arith.constant 6 : i32
    %c8_i32_43 = arith.constant 8 : i32
    %146 = arith.muli %c6_i32, %c8_i32_43 : i32
    %147 = tpu.assume_multiple %146, 8 : i32
    %148 = arith.index_cast %147 : i32 to index
    %c0_44 = arith.constant 0 : index
    %149 = vector.load %arg7[%148, %c0_44] : memref<64x512xf32, #tpu.memory_space<vmem>>, vector<8x512xf32>
    %c0_45 = arith.constant 0 : index
    %c0_46 = arith.constant 0 : index
    %150 = vector.load %arg3[%c0_45, %c0_46] : memref<128x512xf32, #tpu.memory_space<vmem>>, vector<128x512xf32>
    %cst_47 = arith.constant dense<0.000000e+00> : vector<8x512xf32>
    %151 = tpu.matmul %145, %150, %cst_47 {dimension_numbers = #tpu.dot_dimension_numbers<[1], [0], [0], [1], [0, 0, 1, 1], [], []>} : vector<8x128xf32>, vector<128x512xf32>, vector<8x512xf32> -> vector<8x512xf32>
    %152 = arith.addf %149, %151 : vector<8x512xf32>
    %153 = vector.extract_strided_slice %152 {offsets = [0, 0], sizes = [8, 384], strides = [1, 1]} : vector<8x512xf32> to vector<8x384xf32>
    %154 = arith.negf %153 : vector<8x384xf32>
    %155 = math.exp %154 : vector<8x384xf32>
    %cst_48 = arith.constant 1.000000e+00 : f32
    %156 = vector.broadcast %cst_48 : f32 to vector<8x384xf32>
    %157 = arith.addf %156, %155 : vector<8x384xf32>
    %158 = arith.divf %156, %157 : vector<8x384xf32>
    %159 = vector.extract_strided_slice %152 {offsets = [0, 384], sizes = [8, 128], strides = [1, 1]} : vector<8x512xf32> to vector<8x128xf32>
    %160 = math.tanh %159 : vector<8x128xf32>
    %161 = vector.extract_strided_slice %158 {offsets = [0, 0], sizes = [8, 128], strides = [1, 1]} : vector<8x384xf32> to vector<8x128xf32>
    %162 = vector.extract_strided_slice %158 {offsets = [0, 128], sizes = [8, 128], strides = [1, 1]} : vector<8x384xf32> to vector<8x128xf32>
    %163 = vector.extract_strided_slice %158 {offsets = [0, 256], sizes = [8, 128], strides = [1, 1]} : vector<8x384xf32> to vector<8x128xf32>
    %164 = arith.mulf %162, %143 : vector<8x128xf32>
    %165 = arith.mulf %161, %160 : vector<8x128xf32>
    %166 = arith.addf %164, %165 : vector<8x128xf32>
    %167 = math.tanh %166 : vector<8x128xf32>
    %168 = arith.mulf %163, %167 : vector<8x128xf32>
    %c7_i32 = arith.constant 7 : i32
    %c8_i32_49 = arith.constant 8 : i32
    %169 = arith.muli %c7_i32, %c8_i32_49 : i32
    %170 = tpu.assume_multiple %169, 8 : i32
    %171 = arith.index_cast %170 : i32 to index
    %c0_50 = arith.constant 0 : index
    %172 = vector.load %arg7[%171, %c0_50] : memref<64x512xf32, #tpu.memory_space<vmem>>, vector<8x512xf32>
    %c0_51 = arith.constant 0 : index
    %c0_52 = arith.constant 0 : index
    %173 = vector.load %arg3[%c0_51, %c0_52] : memref<128x512xf32, #tpu.memory_space<vmem>>, vector<128x512xf32>
    %cst_53 = arith.constant dense<0.000000e+00> : vector<8x512xf32>
    %174 = tpu.matmul %168, %173, %cst_53 {dimension_numbers = #tpu.dot_dimension_numbers<[1], [0], [0], [1], [0, 0, 1, 1], [], []>} : vector<8x128xf32>, vector<128x512xf32>, vector<8x512xf32> -> vector<8x512xf32>
    %175 = arith.addf %172, %174 : vector<8x512xf32>
    %176 = vector.extract_strided_slice %175 {offsets = [0, 0], sizes = [8, 384], strides = [1, 1]} : vector<8x512xf32> to vector<8x384xf32>
    %177 = arith.negf %176 : vector<8x384xf32>
    %178 = math.exp %177 : vector<8x384xf32>
    %cst_54 = arith.constant 1.000000e+00 : f32
    %179 = vector.broadcast %cst_54 : f32 to vector<8x384xf32>
    %180 = arith.addf %179, %178 : vector<8x384xf32>
    %181 = arith.divf %179, %180 : vector<8x384xf32>
    %182 = vector.extract_strided_slice %175 {offsets = [0, 384], sizes = [8, 128], strides = [1, 1]} : vector<8x512xf32> to vector<8x128xf32>
    %183 = math.tanh %182 : vector<8x128xf32>
    %184 = vector.extract_strided_slice %181 {offsets = [0, 0], sizes = [8, 128], strides = [1, 1]} : vector<8x384xf32> to vector<8x128xf32>
    %185 = vector.extract_strided_slice %181 {offsets = [0, 128], sizes = [8, 128], strides = [1, 1]} : vector<8x384xf32> to vector<8x128xf32>
    %186 = vector.extract_strided_slice %181 {offsets = [0, 256], sizes = [8, 128], strides = [1, 1]} : vector<8x384xf32> to vector<8x128xf32>
    %187 = arith.mulf %185, %166 : vector<8x128xf32>
    %188 = arith.mulf %184, %183 : vector<8x128xf32>
    %189 = arith.addf %187, %188 : vector<8x128xf32>
    %190 = math.tanh %189 : vector<8x128xf32>
    %191 = arith.mulf %186, %190 : vector<8x128xf32>
    %c8_i32_55 = arith.constant 8 : i32
    %c0_56 = arith.constant 0 : index
    %c0_57 = arith.constant 0 : index
    %192 = vector.load %arg4[%c0_56, %c0_57] : memref<1x128xf32, #tpu.memory_space<vmem>>, vector<1x128xf32>
    %193 = vector.broadcast %192 : vector<1x128xf32> to vector<8x128xf32>
    %194 = arith.mulf %191, %193 : vector<8x128xf32>
    %cst_58 = arith.constant dense<0.000000e+00> : vector<8xf32>
    %195 = vector.multi_reduction <add>, %194, %cst_58 [1] : vector<8x128xf32> to vector<8xf32>
    %196 = vector.shape_cast %195 : vector<8xf32> to vector<8x1xf32>
    %c0_59 = arith.constant 0 : index
    %c0_60 = arith.constant 0 : index
    %197 = vector.load %arg5[%c0_59, %c0_60] : memref<1x1xf32, #tpu.memory_space<vmem>>, vector<1x1xf32>
    %198 = vector.broadcast %197 : vector<1x1xf32> to vector<8x1xf32>
    %199 = arith.addf %196, %198 : vector<8x1xf32>
    %c0_61 = arith.constant 0 : index
    %c0_62 = arith.constant 0 : index
    %200 = vector.load %arg6[%c0_61, %c0_62] : memref<8x1xf32, #tpu.memory_space<vmem>>, vector<8x1xf32>
    tpu.vector_store %arg6[%c0_61, %c0_62], %199 {strides = array<i32>} : memref<8x1xf32, #tpu.memory_space<vmem>>, vector<8x1xf32>,
    return
  }
}

</mosaic_0001>

<llo_original>
// kernel: tpu_custom_call.1
$region0: #{tpu_custom_call.1}
  #allocation0 [shape = 'u32[]', space=smem, size = 0x4, offset = 0x4, fixed_abs, tag = 'smem constant byte address 0x4 - core index']
  #allocation1 [shape = 'u32[72,128]{1,0:T(1,128)}', space=vmem, size = 0x9000, scoped, tag = 'internal scratch']
  #allocation2 [shape = 'f32[64,512]{1,0:T(8,128)}', space=vmem, size = 0x20000, scoped, tag = 'scratch operand']
  #allocation3 [shape = 'f32[1,1]{1,0:T(1,128)S(1)}', space=vmem, size = 0x200, scoped, tag = 'scoped memory for tpu_custom_call.1']
  %s0 = inlined_call_operand.hbm [shape: bf16[64,64], index: 0, kind: input, shape index: {}]
  %s1 = inlined_call_operand.hbm [shape: bf16[64,512], index: 1, kind: input, shape index: {}]
  %s2 = inlined_call_operand.hbm [shape: f32[1,512], index: 2, kind: input, shape index: {}]
  %s3 = inlined_call_operand.hbm [shape: f32[128,512], index: 3, kind: input, shape index: {}]
  %s4 = inlined_call_operand.vmem [shape: f32[1,128], index: 4, kind: input, shape index: {}]
  %s5 = inlined_call_operand.<no memory space> [shape: f32[1,1], index: 5, kind: input, shape index: {}]
  %s6 = inlined_call_operand.vmem [shape: f32[8,1], index: 6, kind: output, shape index: {}]
  %s7 = sld [smem:[#allocation0]]
  $region50: #{tpu_custom_call.1} parent=0
    _
  %s9 = ssub.s32 1, %s7
  %s10 = scalar_select 0, %s9, %s7
  %v11 = vstv %s5
  %12 = vst [vmem:[#allocation3] sm:$0x1] %v11
  $region1: #{tpu_custom_call.1} parent=0
    #allocation4 [shape = 'u8[16384]{0}', space=vmem, size = 0x4000, scoped, tag = 'input window, operand 0, single buffered']
    #allocation5 [shape = 's32[1]{0}', space=sflag, size = 0x4, scoped, tag = 'scoped memory for tpu_custom_call.1']
    #allocation6 [shape = 'u8[65536]{0}', space=vmem, size = 0x10000, scoped, tag = 'input window, operand 1, single buffered']
    #allocation7 [shape = 's32[1]{0}', space=sflag, size = 0x4, scoped, tag = 'scoped memory for tpu_custom_call.1']
    #allocation8 [shape = 'u8[2048]{0}', space=vmem, size = 0x800, scoped, tag = 'input window, operand 2, single buffered']
    #allocation9 [shape = 'u8[262144]{0}', space=vmem, size = 0x40000, scoped, tag = 'input window, operand 3, single buffered']
    #allocation10 [shape = 's32[1]{0}', space=sflag, size = 0x4, scoped, tag = 'scoped memory for tpu_custom_call.1']
    %13 = vsyncpa [#allocation5], 0
    %14 = vsyncpa [#allocation7], 0
    %15 = vsyncpa [#allocation10], 0
    // Predicated region
    $region2: #{tpu_custom_call.1} parent=1 // pred_check
      _
    $region3: #{tpu_custom_call.1} parent=1 // pred_check_branch
      %17 = sbr.rel (0) target = $region5
    $region4: #{tpu_custom_call.1} parent=1 // pred_region
      %19 = vsyncadd [#allocation5], 0
      %s20 = sshll.u32 %s0, 4
      %s21 = int_to_ptr.hbm [resolvable:$true] %s20
      %s22 = sshll.u32 [#allocation4], 4
      %s23 = int_to_ptr.vmem [resolvable:$true] %s22
      %28 = dma.hbm_to_vmem [thread:$0]  %s21, 512, %s23, [#allocation5], 64, 64, 4
    $region5: #{tpu_custom_call.1} parent=1 // pred_fallthru
      _
    // Predicated region
    $region6: #{tpu_custom_call.1} parent=1 // pred_check
      _
    $region7: #{tpu_custom_call.1} parent=1 // pred_check_branch
      %30 = sbr.rel (0) target = $region9
    $region8: #{tpu_custom_call.1} parent=1 // pred_region
      %32 = vsyncadd [#allocation7], 0
      %s33 = sshll.u32 %s1, 4
      %s34 = int_to_ptr.hbm [resolvable:$true] %s33
      %s35 = sshll.u32 [#allocation6], 4
      %s36 = int_to_ptr.vmem [resolvable:$true] %s35
      %41 = dma.hbm_to_vmem [thread:$0]  %s34, 2048, %s36, [#allocation7], 256, 256, 16
    $region9: #{tpu_custom_call.1} parent=1 // pred_fallthru
      _
    // Predicated region
    $region10: #{tpu_custom_call.1} parent=1 // pred_check
      _
    $region11: #{tpu_custom_call.1} parent=1 // pred_check_branch
      %43 = sbr.rel (0) target = $region13
    $region12: #{tpu_custom_call.1} parent=1 // pred_region
      %45 = vsyncadd [#allocation7], 0
      %s47 = sshll.u32 %s2, 4
      %s48 = int_to_ptr.hbm [resolvable:$true] %s47
      %s49 = sshll.u32 [#allocation8], 4
      %s50 = int_to_ptr.vmem [resolvable:$true] %s49
      %52 = dma.hbm_to_vmem [thread:$0]  %s48, 64, %s50, [#allocation7]
    $region13: #{tpu_custom_call.1} parent=1 // pred_fallthru
      _
    // Predicated region
    $region14: #{tpu_custom_call.1} parent=1 // pred_check
      _
    $region15: #{tpu_custom_call.1} parent=1 // pred_check_branch
      %54 = sbr.rel (0) target = $region17
    $region16: #{tpu_custom_call.1} parent=1 // pred_region
      %56 = vsyncadd [#allocation10], 0
      %s57 = sshll.u32 %s3, 4
      %s58 = int_to_ptr.hbm [resolvable:$true] %s57
      %s59 = sshll.u32 [#allocation9], 4
      %s60 = int_to_ptr.vmem [resolvable:$true] %s59
      %65 = dma.hbm_to_vmem [thread:$0]  %s58, 8192, %s60, [#allocation10], 512, 512, 32
    $region17: #{tpu_custom_call.1} parent=1 // pred_fallthru
      _
    // Predicated region
    $region18: #{tpu_custom_call.1} parent=1 // pred_check
      _
    $region19: #{tpu_custom_call.1} parent=1 // pred_check_branch
      %67 = sbr.rel (0) target = $region21
    $region20: #{tpu_custom_call.1} parent=1 // pred_region
      _
    $region21: #{tpu_custom_call.1} parent=1 // pred_fallthru
      _
    // Predicated region
    $region22: #{tpu_custom_call.1} parent=1 // pred_check
      _
    $region23: #{tpu_custom_call.1} parent=1 // pred_check_branch
      %69 = sbr.rel (0) target = $region25
    $region24: #{tpu_custom_call.1} parent=1 // pred_region
      _
    $region25: #{tpu_custom_call.1} parent=1 // pred_fallthru
      _
    // Predicated region
    $region26: #{tpu_custom_call.1} parent=1 // pred_check
      _
    $region27: #{tpu_custom_call.1} parent=1 // pred_check_branch
      %71 = sbr.rel (0) target = $region29
    $region28: #{tpu_custom_call.1} parent=1 // pred_region
      %73 = dma.done [#allocation5], 512
    $region29: #{tpu_custom_call.1} parent=1 // pred_fallthru
      _
    // Predicated region
    $region30: #{tpu_custom_call.1} parent=1 // pred_check
      _
    $region31: #{tpu_custom_call.1} parent=1 // pred_check_branch
      %75 = sbr.rel (0) target = $region33
    $region32: #{tpu_custom_call.1} parent=1 // pred_region
      %77 = dma.done [#allocation7], 2048
    $region33: #{tpu_custom_call.1} parent=1 // pred_fallthru
      _
    // Predicated region
    $region34: #{tpu_custom_call.1} parent=1 // pred_check
      _
    $region35: #{tpu_custom_call.1} parent=1 // pred_check_branch
      %79 = sbr.rel (0) target = $region37
    $region36: #{tpu_custom_call.1} parent=1 // pred_region
      %81 = dma.done [#allocation7], 64
    $region37: #{tpu_custom_call.1} parent=1 // pred_fallthru
      _
    // Predicated region
    $region38: #{tpu_custom_call.1} parent=1 // pred_check
      _
    $region39: #{tpu_custom_call.1} parent=1 // pred_check_branch
      %83 = sbr.rel (0) target = $region41
    $region40: #{tpu_custom_call.1} parent=1 // pred_region
      %85 = dma.done [#allocation10], 8192
    $region41: #{tpu_custom_call.1} parent=1 // pred_fallthru
      _
    %v87 = vld [vmem:[#allocation4] sm:$0xf]
    %v88 = vld [vmem:[#allocation4 + $0x4] sm:$0xf]
    %v89 = vld [vmem:[#allocation4 + $0x8] sm:$0xf]
    %v90 = vld [vmem:[#allocation4 + $0xc] sm:$0xf]
    %v91 = vld [vmem:[#allocation4 + $0x10] sm:$0xf]
    %v92 = vld [vmem:[#allocation4 + $0x14] sm:$0xf]
    %v93 = vld [vmem:[#allocation4 + $0x18] sm:$0xf]
    %v94 = vld [vmem:[#allocation4 + $0x1c] sm:$0xf]
    %v95 = vld [vmem:[#allocation6] sm:$0xff]
    %v96 = vld [vmem:[#allocation6 + $0x8] sm:$0xff]
    %v97 = vld [vmem:[#allocation6 + $0x10] sm:$0xff]
    %v98 = vld [vmem:[#allocation6 + $0x18] sm:$0xff]
    %v99 = vld [vmem:[#allocation6 + $0x20] sm:$0xff]
    %v100 = vld [vmem:[#allocation6 + $0x28] sm:$0xff]
    %v101 = vld [vmem:[#allocation6 + $0x30] sm:$0xff]
    %v102 = vld [vmem:[#allocation6 + $0x38] sm:$0xff]
    %v103 = vld [vmem:[#allocation6 + $0x40] sm:$0xff]
    %v104 = vld [vmem:[#allocation6 + $0x48] sm:$0xff]
    %v105 = vld [vmem:[#allocation6 + $0x50] sm:$0xff]
    %v106 = vld [vmem:[#allocation6 + $0x58] sm:$0xff]
    %v107 = vld [vmem:[#allocation6 + $0x60] sm:$0xff]
    %v108 = vld [vmem:[#allocation6 + $0x68] sm:$0xff]
    %v109 = vld [vmem:[#allocation6 + $0x70] sm:$0xff]
    %v110 = vld [vmem:[#allocation6 + $0x78] sm:$0xff]
    %v111 = vld [vmem:[#allocation8] sm:$0xf]
    %v113 = vperm.slane %v111, 0
    %v114 = vperm.slane %v111, 1
    %v115 = vperm.slane %v111, 2
    %v116 = vperm.slane %v111, 3
    %v129 = vunpack.c.l.b16 %v87
    %v130 = vunpack.c.l.b16 %v88
    %v131 = vunpack.c.l.b16 %v89
    %v132 = vunpack.c.l.b16 %v90
    %v133 = vunpack.c.l.b16 %v91
    %v134 = vunpack.c.l.b16 %v92
    %v135 = vunpack.c.l.b16 %v93
    %v136 = vunpack.c.l.b16 %v94
    %v137 = vpack.c.b16 %v130, %v129
    %v138 = vpack.c.b16 %v132, %v131
    %v139 = vpack.c.b16 %v134, %v133
    %v140 = vpack.c.b16 %v136, %v135
    %v157 = vunpack.c.l.b16 %v95
    %v158 = vunpack.c.h.b16 %v95
    %v159 = vunpack.c.l.b16 %v96
    %v160 = vunpack.c.h.b16 %v96
    %v161 = vunpack.c.l.b16 %v97
    %v162 = vunpack.c.h.b16 %v97
    %v163 = vunpack.c.l.b16 %v98
    %v164 = vunpack.c.h.b16 %v98
    %v165 = vunpack.c.l.b16 %v99
    %v166 = vunpack.c.h.b16 %v99
    %v167 = vunpack.c.l.b16 %v100
    %v168 = vunpack.c.h.b16 %v100
    %v169 = vunpack.c.l.b16 %v101
    %v170 = vunpack.c.h.b16 %v101
    %v171 = vunpack.c.l.b16 %v102
    %v172 = vunpack.c.h.b16 %v102
    %v173 = vunpack.c.l.b16 %v103
    %v174 = vunpack.c.h.b16 %v103
    %v175 = vunpack.c.l.b16 %v104
    %v176 = vunpack.c.h.b16 %v104
    %v177 = vunpack.c.l.b16 %v105
    %v178 = vunpack.c.h.b16 %v105
    %v179 = vunpack.c.l.b16 %v106
    %v180 = vunpack.c.h.b16 %v106
    %v181 = vunpack.c.l.b16 %v107
    %v182 = vunpack.c.h.b16 %v107
    %v183 = vunpack.c.l.b16 %v108
    %v184 = vunpack.c.h.b16 %v108
    %v185 = vunpack.c.l.b16 %v109
    %v186 = vunpack.c.h.b16 %v109
    %v187 = vunpack.c.l.b16 %v110
    %v188 = vunpack.c.h.b16 %v110
    %v189 = vpack.c.b16 %v161, %v157
    %v190 = vpack.c.b16 %v162, %v158
    %v191 = vpack.c.b16 %v163, %v159
    %v192 = vpack.c.b16 %v164, %v160
    %v193 = vpack.c.b16 %v169, %v165
    %v194 = vpack.c.b16 %v170, %v166
    %v195 = vpack.c.b16 %v171, %v167
    %v196 = vpack.c.b16 %v172, %v168
    %v197 = vpack.c.b16 %v177, %v173
    %v198 = vpack.c.b16 %v178, %v174
    %v199 = vpack.c.b16 %v179, %v175
    %v200 = vpack.c.b16 %v180, %v176
    %v201 = vpack.c.b16 %v185, %v181
    %v202 = vpack.c.b16 %v186, %v182
    %v203 = vpack.c.b16 %v187, %v183
    %v204 = vpack.c.b16 %v188, %v184
    %vm221 = vcmask 523264
    %v223 = vsel %vm221, %v137, 0
    %v226 = vsel %vm221, %v138, 0
    %v229 = vsel %vm221, %v139, 0
    %v232 = vsel %vm221, %v140, 0
    %234 = vmatpush.bf16.msra.mxu0 0
    %235 = vmatpush.bf16.msra.mxu0 0
    %236 = vmatpush.bf16.msra.mxu0 0
    %237 = vmatpush.bf16.msra.mxu0 0
    %238 = vmatpush.bf16.msra.mxu0 %v201
    %239 = vmatpush.bf16.msra.mxu0 %v197
    %240 = vmatpush.bf16.msra.mxu0 %v193
    %241 = vmatpush.bf16.msra.mxu0 %v189
    %242 = vmatmul.bf16.gmra.mxu0 %v223
    %v243 = vpop.f32.mrf.mxu0
    %v244 = vadd.f32 %v113, %v243
    %v245 = vpop.f32.mrf.mxu0
    %v246 = vadd.f32 %v113, %v245
    %247 = vmatmul.bf16.gmra.mxu0 %v226
    %v248 = vpop.f32.mrf.mxu0
    %v249 = vadd.f32 %v113, %v248
    %v250 = vpop.f32.mrf.mxu0
    %v251 = vadd.f32 %v113, %v250
    %252 = vmatmul.bf16.gmra.mxu0 %v229
    %v253 = vpop.f32.mrf.mxu0
    %v254 = vadd.f32 %v113, %v253
    %v255 = vpop.f32.mrf.mxu0
    %v256 = vadd.f32 %v113, %v255
    %257 = vmatmul.bf16.gmra.mxu0 %v232
    %v258 = vpop.f32.mrf.mxu0
    %v259 = vadd.f32 %v113, %v258
    %v260 = vpop.f32.mrf.mxu0
    %v261 = vadd.f32 %v113, %v260
    %262 = vdwg.mxu0
    %263 = vmatpush.bf16.msra.mxu0 0
    %264 = vmatpush.bf16.msra.mxu0 0
    %265 = vmatpush.bf16.msra.mxu0 0
    %266 = vmatpush.bf16.msra.mxu0 0
    %267 = vmatpush.bf16.msra.mxu0 %v202
    %268 = vmatpush.bf16.msra.mxu0 %v198
    %269 = vmatpush.bf16.msra.mxu0 %v194
    %270 = vmatpush.bf16.msra.mxu0 %v190
    %271 = vmatmul.bf16.gmra.mxu0 %v223
    %v272 = vpop.f32.mrf.mxu0
    %v273 = vadd.f32 %v114, %v272
    %v274 = vpop.f32.mrf.mxu0
    %v275 = vadd.f32 %v114, %v274
    %276 = vmatmul.bf16.gmra.mxu0 %v226
    %v277 = vpop.f32.mrf.mxu0
    %v278 = vadd.f32 %v114, %v277
    %v279 = vpop.f32.mrf.mxu0
    %v280 = vadd.f32 %v114, %v279
    %281 = vmatmul.bf16.gmra.mxu0 %v229
    %v282 = vpop.f32.mrf.mxu0
    %v283 = vadd.f32 %v114, %v282
    %v284 = vpop.f32.mrf.mxu0
    %v285 = vadd.f32 %v114, %v284
    %286 = vmatmul.bf16.gmra.mxu0 %v232
    %v287 = vpop.f32.mrf.mxu0
    %v288 = vadd.f32 %v114, %v287
    %v289 = vpop.f32.mrf.mxu0
    %v290 = vadd.f32 %v114, %v289
    %291 = vdwg.mxu0
    %292 = vmatpush.bf16.msra.mxu0 0
    %293 = vmatpush.bf16.msra.mxu0 0
    %294 = vmatpush.bf16.msra.mxu0 0
    %295 = vmatpush.bf16.msra.mxu0 0
    %296 = vmatpush.bf16.msra.mxu0 %v203
    %297 = vmatpush.bf16.msra.mxu0 %v199
    %298 = vmatpush.bf16.msra.mxu0 %v195
    %299 = vmatpush.bf16.msra.mxu0 %v191
    %300 = vmatmul.bf16.gmra.mxu0 %v223
    %v301 = vpop.f32.mrf.mxu0
    %v302 = vadd.f32 %v115, %v301
    %v303 = vpop.f32.mrf.mxu0
    %v304 = vadd.f32 %v115, %v303
    %305 = vmatmul.bf16.gmra.mxu0 %v226
    %v306 = vpop.f32.mrf.mxu0
    %v307 = vadd.f32 %v115, %v306
    %v308 = vpop.f32.mrf.mxu0
    %v309 = vadd.f32 %v115, %v308
    %310 = vmatmul.bf16.gmra.mxu0 %v229
    %v311 = vpop.f32.mrf.mxu0
    %v312 = vadd.f32 %v115, %v311
    %v313 = vpop.f32.mrf.mxu0
    %v314 = vadd.f32 %v115, %v313
    %315 = vmatmul.bf16.gmra.mxu0 %v232
    %v316 = vpop.f32.mrf.mxu0
    %v317 = vadd.f32 %v115, %v316
    %v318 = vpop.f32.mrf.mxu0
    %v319 = vadd.f32 %v115, %v318
    %320 = vdwg.mxu0
    %321 = vmatpush.bf16.msra.mxu0 0
    %322 = vmatpush.bf16.msra.mxu0 0
    %323 = vmatpush.bf16.msra.mxu0 0
    %324 = vmatpush.bf16.msra.mxu0 0
    %325 = vmatpush.bf16.msra.mxu0 %v204
    %326 = vmatpush.bf16.msra.mxu0 %v200
    %327 = vmatpush.bf16.msra.mxu0 %v196
    %328 = vmatpush.bf16.msra.mxu0 %v192
    %329 = vmatmul.bf16.gmra.mxu0 %v223
    %v330 = vpop.f32.mrf.mxu0
    %v331 = vadd.f32 %v116, %v330
    %v332 = vpop.f32.mrf.mxu0
    %v333 = vadd.f32 %v116, %v332
    %334 = vmatmul.bf16.gmra.mxu0 %v226
    %v335 = vpop.f32.mrf.mxu0
    %v336 = vadd.f32 %v116, %v335
    %v337 = vpop.f32.mrf.mxu0
    %v338 = vadd.f32 %v116, %v337
    %339 = vmatmul.bf16.gmra.mxu0 %v229
    %v340 = vpop.f32.mrf.mxu0
    %v341 = vadd.f32 %v116, %v340
    %v342 = vpop.f32.mrf.mxu0
    %v343 = vadd.f32 %v116, %v342
    %344 = vmatmul.bf16.gmra.mxu0 %v232
    %v345 = vpop.f32.mrf.mxu0
    %v346 = vadd.f32 %v116, %v345
    %v347 = vpop.f32.mrf.mxu0
    %v348 = vadd.f32 %v116, %v347
    %349 = vdwg.mxu0
    %350 = vst [vmem:[#allocation2] sm:$0xff] %v244
    %351 = vst [vmem:[#allocation2 + $0x8] sm:$0xff] %v273
    %352 = vst [vmem:[#allocation2 + $0x10] sm:$0xff] %v302
    %353 = vst [vmem:[#allocation2 + $0x18] sm:$0xff] %v331
    %354 = vst [vmem:[#allocation2 + $0x20] sm:$0xff] %v246
    %355 = vst [vmem:[#allocation2 + $0x28] sm:$0xff] %v275
    %356 = vst [vmem:[#allocation2 + $0x30] sm:$0xff] %v304
    %357 = vst [vmem:[#allocation2 + $0x38] sm:$0xff] %v333
    %358 = vst [vmem:[#allocation2 + $0x40] sm:$0xff] %v249
    %359 = vst [vmem:[#allocation2 + $0x48] sm:$0xff] %v278
    %360 = vst [vmem:[#allocation2 + $0x50] sm:$0xff] %v307
    %361 = vst [vmem:[#allocation2 + $0x58] sm:$0xff] %v336
    %362 = vst [vmem:[#allocation2 + $0x60] sm:$0xff] %v251
    %363 = vst [vmem:[#allocation2 + $0x68] sm:$0xff] %v280
    %364 = vst [vmem:[#allocation2 + $0x70] sm:$0xff] %v309
    %365 = vst [vmem:[#allocation2 + $0x78] sm:$0xff] %v338
    %366 = vst [vmem:[#allocation2 + $0x80] sm:$0xff] %v254
    %367 = vst [vmem:[#allocation2 + $0x88] sm:$0xff] %v283
    %368 = vst [vmem:[#allocation2 + $0x90] sm:$0xff] %v312
    %369 = vst [vmem:[#allocation2 + $0x98] sm:$0xff] %v341
    %370 = vst [vmem:[#allocation2 + $0xa0] sm:$0xff] %v256
    %371 = vst [vmem:[#allocation2 + $0xa8] sm:$0xff] %v285
    %372 = vst [vmem:[#allocation2 + $0xb0] sm:$0xff] %v314
    %373 = vst [vmem:[#allocation2 + $0xb8] sm:$0xff] %v343
    %374 = vst [vmem:[#allocation2 + $0xc0] sm:$0xff] %v259
    %375 = vst [vmem:[#allocation2 + $0xc8] sm:$0xff] %v288
    %376 = vst [vmem:[#allocation2 + $0xd0] sm:$0xff] %v317
    %377 = vst [vmem:[#allocation2 + $0xd8] sm:$0xff] %v346
    %378 = vst [vmem:[#allocation2 + $0xe0] sm:$0xff] %v261
    %379 = vst [vmem:[#allocation2 + $0xe8] sm:$0xff] %v290
    %380 = vst [vmem:[#allocation2 + $0xf0] sm:$0xff] %v319
    %381 = vst [vmem:[#allocation2 + $0xf8] sm:$0xff] %v348
    %s382 = smul.u32 0, 4
    %s383 = smul.addr %s382, 8
    %s384 = scalar_lea.vmem [#allocation2], %s383
    %v385 = vld [vmem:[%s384] sm:$0xff]
    %v386 = vld [vmem:[%s384 + $0x8] sm:$0xff]
    %v387 = vld [vmem:[%s384 + $0x10] sm:$0xff]
    %v388 = vld [vmem:[%s384 + $0x18] sm:$0xff]
    %v389 = vld [vmem:[#allocation9] sm:$0xff]
    %v390 = vld [vmem:[#allocation9 + $0x8] sm:$0xff]
    %v391 = vld [vmem:[#allocation9 + $0x10] sm:$0xff]
    %v392 = vld [vmem:[#allocation9 + $0x18] sm:$0xff]
    %v393 = vld [vmem:[#allocation9 + $0x20] sm:$0xff]
    %v394 = vld [vmem:[#allocation9 + $0x28] sm:$0xff]
    %v395 = vld [vmem:[#allocation9 + $0x30] sm:$0xff]
    %v396 = vld [vmem:[#allocation9 + $0x38] sm:$0xff]
    %v397 = vld [vmem:[#allocation9 + $0x40] sm:$0xff]
    %v398 = vld [vmem:[#allocation9 + $0x48] sm:$0xff]
    %v399 = vld [vmem:[#allocation9 + $0x50] sm:$0xff]
    %v400 = vld [vmem:[#allocation9 + $0x58] sm:$0xff]
    %v401 = vld [vmem:[#allocation9 + $0x60] sm:$0xff]
    %v402 = vld [vmem:[#allocation9 + $0x68] sm:$0xff]
    %v403 = vld [vmem:[#allocation9 + $0x70] sm:$0xff]
    %v404 = vld [vmem:[#allocation9 + $0x78] sm:$0xff]
    %v405 = vld [vmem:[#allocation9 + $0x80] sm:$0xff]
    %v406 = vld [vmem:[#allocation9 + $0x88] sm:$0xff]
    %v407 = vld [vmem:[#allocation9 + $0x90] sm:$0xff]
    %v408 = vld [vmem:[#allocation9 + $0x98] sm:$0xff]
    %v409 = vld [vmem:[#allocation9 + $0xa0] sm:$0xff]
    %v410 = vld [vmem:[#allocation9 + $0xa8] sm:$0xff]
    %v411 = vld [vmem:[#allocation9 + $0xb0] sm:$0xff]
    %v412 = vld [vmem:[#allocation9 + $0xb8] sm:$0xff]
    %v413 = vld [vmem:[#allocation9 + $0xc0] sm:$0xff]
    %v414 = vld [vmem:[#allocation9 + $0xc8] sm:$0xff]
    %v415 = vld [vmem:[#allocation9 + $0xd0] sm:$0xff]
    %v416 = vld [vmem:[#allocation9 + $0xd8] sm:$0xff]
    %v417 = vld [vmem:[#allocation9 + $0xe0] sm:$0xff]
    %v418 = vld [vmem:[#allocation9 + $0xe8] sm:$0xff]
    %v419 = vld [vmem:[#allocation9 + $0xf0] sm:$0xff]
    %v420 = vld [vmem:[#allocation9 + $0xf8] sm:$0xff]
    %v421 = vld [vmem:[#allocation9 + $0x100] sm:$0xff]
    %v422 = vld [vmem:[#allocation9 + $0x108] sm:$0xff]
    %v423 = vld [vmem:[#allocation9 + $0x110] sm:$0xff]
    %v424 = vld [vmem:[#allocation9 + $0x118] sm:$0xff]
    %v425 = vld [vmem:[#allocation9 + $0x120] sm:$0xff]
    %v426 = vld [vmem:[#allocation9 + $0x128] sm:$0xff]
    %v427 = vld [vmem:[#allocation9 + $0x130] sm:$0xff]
    %v428 = vld [vmem:[#allocation9 + $0x138] sm:$0xff]
    %v429 = vld [vmem:[#allocation9 + $0x140] sm:$0xff]
    %v430 = vld [vmem:[#allocation9 + $0x148] sm:$0xff]
    %v431 = vld [vmem:[#allocation9 + $0x150] sm:$0xff]
    %v432 = vld [vmem:[#allocation9 + $0x158] sm:$0xff]
    %v433 = vld [vmem:[#allocation9 + $0x160] sm:$0xff]
    %v434 = vld [vmem:[#allocation9 + $0x168] sm:$0xff]
    %v435 = vld [vmem:[#allocation9 + $0x170] sm:$0xff]
    %v436 = vld [vmem:[#allocation9 + $0x178] sm:$0xff]
    %v437 = vld [vmem:[#allocation9 + $0x180] sm:$0xff]
    %v438 = vld [vmem:[#allocation9 + $0x188] sm:$0xff]
    %v439 = vld [vmem:[#allocation9 + $0x190] sm:$0xff]
    %v440 = vld [vmem:[#allocation9 + $0x198] sm:$0xff]
    %v441 = vld [vmem:[#allocation9 + $0x1a0] sm:$0xff]
    %v442 = vld [vmem:[#allocation9 + $0x1a8] sm:$0xff]
    %v443 = vld [vmem:[#allocation9 + $0x1b0] sm:$0xff]
    %v444 = vld [vmem:[#allocation9 + $0x1b8] sm:$0xff]
    %v445 = vld [vmem:[#allocation9 + $0x1c0] sm:$0xff]
    %v446 = vld [vmem:[#allocation9 + $0x1c8] sm:$0xff]
    %v447 = vld [vmem:[#allocation9 + $0x1d0] sm:$0xff]
    %v448 = vld [vmem:[#allocation9 + $0x1d8] sm:$0xff]
    %v449 = vld [vmem:[#allocation9 + $0x1e0] sm:$0xff]
    %v450 = vld [vmem:[#allocation9 + $0x1e8] sm:$0xff]
    %v451 = vld [vmem:[#allocation9 + $0x1f0] sm:$0xff]
    %v452 = vld [vmem:[#allocation9 + $0x1f8] sm:$0xff]
    %453 = vmatpush.msra.mxu0 %v449
    %454 = vmatpush.msra.mxu0 %v445
    %455 = vmatpush.msra.mxu0 %v441
    %456 = vmatpush.msra.mxu0 %v437
    %457 = vmatpush.msra.mxu0 %v433
    %458 = vmatpush.msra.mxu0 %v429
    %459 = vmatpush.msra.mxu0 %v425
    %460 = vmatpush.msra.mxu0 %v421
    %461 = vmatpush.msra.mxu0 %v417
    %462 = vmatpush.msra.mxu0 %v413
    %463 = vmatpush.msra.mxu0 %v409
    %464 = vmatpush.msra.mxu0 %v405
    %465 = vmatpush.msra.mxu0 %v401
    %466 = vmatpush.msra.mxu0 %v397
    %467 = vmatpush.msra.mxu0 %v393
    %468 = vmatpush.msra.mxu0 %v389
    %469 = vmatmul.f32.gmra.mxu0 0.0
    %v470 = vpop.f32.mrf.mxu0
    %v471 = vadd.f32 0.0, %v470
    %472 = vdwg.mxu0
    %473 = vmatpush.msra.mxu0 %v450
    %474 = vmatpush.msra.mxu0 %v446
    %475 = vmatpush.msra.mxu0 %v442
    %476 = vmatpush.msra.mxu0 %v438
    %477 = vmatpush.msra.mxu0 %v434
    %478 = vmatpush.msra.mxu0 %v430
    %479 = vmatpush.msra.mxu0 %v426
    %480 = vmatpush.msra.mxu0 %v422
    %481 = vmatpush.msra.mxu0 %v418
    %482 = vmatpush.msra.mxu0 %v414
    %483 = vmatpush.msra.mxu0 %v410
    %484 = vmatpush.msra.mxu0 %v406
    %485 = vmatpush.msra.mxu0 %v402
    %486 = vmatpush.msra.mxu0 %v398
    %487 = vmatpush.msra.mxu0 %v394
    %488 = vmatpush.msra.mxu0 %v390
    %489 = vmatmul.f32.gmra.mxu0 0.0
    %v490 = vpop.f32.mrf.mxu0
    %v491 = vadd.f32 0.0, %v490
    %492 = vdwg.mxu0
    %493 = vmatpush.msra.mxu0 %v451
    %494 = vmatpush.msra.mxu0 %v447
    %495 = vmatpush.msra.mxu0 %v443
    %496 = vmatpush.msra.mxu0 %v439
    %497 = vmatpush.msra.mxu0 %v435
    %498 = vmatpush.msra.mxu0 %v431
    %499 = vmatpush.msra.mxu0 %v427
    %500 = vmatpush.msra.mxu0 %v423
    %501 = vmatpush.msra.mxu0 %v419
    %502 = vmatpush.msra.mxu0 %v415
    %503 = vmatpush.msra.mxu0 %v411
    %504 = vmatpush.msra.mxu0 %v407
    %505 = vmatpush.msra.mxu0 %v403
    %506 = vmatpush.msra.mxu0 %v399
    %507 = vmatpush.msra.mxu0 %v395
    %508 = vmatpush.msra.mxu0 %v391
    %509 = vmatmul.f32.gmra.mxu0 0.0
    %v510 = vpop.f32.mrf.mxu0
    %v511 = vadd.f32 0.0, %v510
    %512 = vdwg.mxu0
    %513 = vmatpush.msra.mxu0 %v452
    %514 = vmatpush.msra.mxu0 %v448
    %515 = vmatpush.msra.mxu0 %v444
    %516 = vmatpush.msra.mxu0 %v440
    %517 = vmatpush.msra.mxu0 %v436
    %518 = vmatpush.msra.mxu0 %v432
    %519 = vmatpush.msra.mxu0 %v428
    %520 = vmatpush.msra.mxu0 %v424
    %521 = vmatpush.msra.mxu0 %v420
    %522 = vmatpush.msra.mxu0 %v416
    %523 = vmatpush.msra.mxu0 %v412
    %524 = vmatpush.msra.mxu0 %v408
    %525 = vmatpush.msra.mxu0 %v404
    %526 = vmatpush.msra.mxu0 %v400
    %527 = vmatpush.msra.mxu0 %v396
    %528 = vmatpush.msra.mxu0 %v392
    %529 = vmatmul.f32.gmra.mxu0 0.0
    %v530 = vpop.f32.mrf.mxu0
    %v531 = vadd.f32 0.0, %v530
    %532 = vdwg.mxu0
    %v533 = vadd.f32 %v385, %v471
    %v534 = vadd.f32 %v386, %v491
    %v535 = vadd.f32 %v387, %v511
    %v536 = vadd.f32 %v388, %v531
    %v537 = vxor.u32 %v533, 2147483648
    %v538 = vxor.u32 %v534, 2147483648
    %v539 = vxor.u32 %v535, 2147483648
    %v540 = vmul.f32 %v537, 1.442695
    %v541 = vpow.pop %v540
    %v542 = vmul.f32 %v538, 1.442695
    %v543 = vpow.pop %v542
    %v544 = vmul.f32 %v539, 1.442695
    %v545 = vpow.pop %v544
    %v546 = vadd.f32 %v541, 1.0
    %v547 = vadd.f32 %v543, 1.0
    %v548 = vadd.f32 %v545, 1.0
    %v549 = vrcp.pop %v546
    %v550 = vmul.f32 %v546, %v549
    %v551 = vsub.f32 1.0, %v550
    %v552 = vmul.f32 %v549, %v551
    %v553 = vadd.f32 %v549, %v552
    %vm554 = vweird.f32 %v546
    %vm555 = vweird.f32 %v549
    %vm556 = vmor %vm554, %vm555
    %v557 = vsel %vm556, %v549, %v553
    %v558 = vand.u32 2147483647, %v546
    %vm559 = vcmp.eq.f32.partialorder %v558, 8.507059e+37
    %v560 = vand.u32 %v546, 2147483648
    %v561 = vor.u32 1.1754944e-38, %v560
    %v562 = vsel %vm559, %v561, %v557
    %v563 = vmul.f32 1.0, %v562
    %v564 = vrcp.pop %v547
    %v565 = vmul.f32 %v547, %v564
    %v566 = vsub.f32 1.0, %v565
    %v567 = vmul.f32 %v564, %v566
    %v568 = vadd.f32 %v564, %v567
    %vm569 = vweird.f32 %v547
    %vm570 = vweird.f32 %v564
    %vm571 = vmor %vm569, %vm570
    %v572 = vsel %vm571, %v564, %v568
    %v573 = vand.u32 2147483647, %v547
    %vm574 = vcmp.eq.f32.partialorder %v573, 8.507059e+37
    %v575 = vand.u32 %v547, 2147483648
    %v576 = vor.u32 1.1754944e-38, %v575
    %v577 = vsel %vm574, %v576, %v572
    %v578 = vmul.f32 1.0, %v577
    %v579 = vrcp.pop %v548
    %v580 = vmul.f32 %v548, %v579
    %v581 = vsub.f32 1.0, %v580
    %v582 = vmul.f32 %v579, %v581
    %v583 = vadd.f32 %v579, %v582
    %vm584 = vweird.f32 %v548
    %vm585 = vweird.f32 %v579
    %vm586 = vmor %vm584, %vm585
    %v587 = vsel %vm586, %v579, %v583
    %v588 = vand.u32 2147483647, %v548
    %vm589 = vcmp.eq.f32.partialorder %v588, 8.507059e+37
    %v590 = vand.u32 %v548, 2147483648
    %v591 = vor.u32 1.1754944e-38, %v590
    %v592 = vsel %vm589, %v591, %v587
    %v593 = vmul.f32 1.0, %v592
    %v594 = vtanh.pop %v536
    %v595 = vmul.f32 %v578, 0.0
    %v596 = vmul.f32 %v563, %v594
    %v597 = vadd.f32 %v595, %v596
    %v598 = vtanh.pop %v597
    %v599 = vmul.f32 %v593, %v598
    %s600 = smul.u32 1, 4
    %s601 = smul.addr %s600, 8
    %s602 = scalar_lea.vmem [#allocation2], %s601
    %v603 = vld [vmem:[%s602] sm:$0xff]
    %v604 = vld [vmem:[%s602 + $0x8] sm:$0xff]
    %v605 = vld [vmem:[%s602 + $0x10] sm:$0xff]
    %v606 = vld [vmem:[%s602 + $0x18] sm:$0xff]
    %607 = vmatpush.msra.mxu0 %v449
    %608 = vmatpush.msra.mxu0 %v445
    %609 = vmatpush.msra.mxu0 %v441
    %610 = vmatpush.msra.mxu0 %v437
    %611 = vmatpush.msra.mxu0 %v433
    %612 = vmatpush.msra.mxu0 %v429
    %613 = vmatpush.msra.mxu0 %v425
    %614 = vmatpush.msra.mxu0 %v421
    %615 = vmatpush.msra.mxu0 %v417
    %616 = vmatpush.msra.mxu0 %v413
    %617 = vmatpush.msra.mxu0 %v409
    %618 = vmatpush.msra.mxu0 %v405
    %619 = vmatpush.msra.mxu0 %v401
    %620 = vmatpush.msra.mxu0 %v397
    %621 = vmatpush.msra.mxu0 %v393
    %622 = vmatpush.msra.mxu0 %v389
    %623 = vmatmul.f32.gmra.mxu0 %v599
    %v624 = vpop.f32.mrf.mxu0
    %v625 = vadd.f32 0.0, %v624
    %626 = vdwg.mxu0
    %627 = vmatpush.msra.mxu0 %v450
    %628 = vmatpush.msra.mxu0 %v446
    %629 = vmatpush.msra.mxu0 %v442
    %630 = vmatpush.msra.mxu0 %v438
    %631 = vmatpush.msra.mxu0 %v434
    %632 = vmatpush.msra.mxu0 %v430
    %633 = vmatpush.msra.mxu0 %v426
    %634 = vmatpush.msra.mxu0 %v422
    %635 = vmatpush.msra.mxu0 %v418
    %636 = vmatpush.msra.mxu0 %v414
    %637 = vmatpush.msra.mxu0 %v410
    %638 = vmatpush.msra.mxu0 %v406
    %639 = vmatpush.msra.mxu0 %v402
    %640 = vmatpush.msra.mxu0 %v398
    %641 = vmatpush.msra.mxu0 %v394
    %642 = vmatpush.msra.mxu0 %v390
    %643 = vmatmul.f32.gmra.mxu0 %v599
    %v644 = vpop.f32.mrf.mxu0
    %v645 = vadd.f32 0.0, %v644
    %646 = vdwg.mxu0
    %647 = vmatpush.msra.mxu0 %v451
    %648 = vmatpush.msra.mxu0 %v447
    %649 = vmatpush.msra.mxu0 %v443
    %650 = vmatpush.msra.mxu0 %v439
    %651 = vmatpush.msra.mxu0 %v435
    %652 = vmatpush.msra.mxu0 %v431
    %653 = vmatpush.msra.mxu0 %v427
    %654 = vmatpush.msra.mxu0 %v423
    %655 = vmatpush.msra.mxu0 %v419
    %656 = vmatpush.msra.mxu0 %v415
    %657 = vmatpush.msra.mxu0 %v411
    %658 = vmatpush.msra.mxu0 %v407
    %659 = vmatpush.msra.mxu0 %v403
    %660 = vmatpush.msra.mxu0 %v399
    %661 = vmatpush.msra.mxu0 %v395
    %662 = vmatpush.msra.mxu0 %v391
    %663 = vmatmul.f32.gmra.mxu0 %v599
    %v664 = vpop.f32.mrf.mxu0
    %v665 = vadd.f32 0.0, %v664
    %666 = vdwg.mxu0
    %667 = vmatpush.msra.mxu0 %v452
    %668 = vmatpush.msra.mxu0 %v448
    %669 = vmatpush.msra.mxu0 %v444
    %670 = vmatpush.msra.mxu0 %v440
    %671 = vmatpush.msra.mxu0 %v436
    %672 = vmatpush.msra.mxu0 %v432
    %673 = vmatpush.msra.mxu0 %v428
    %674 = vmatpush.msra.mxu0 %v424
    %675 = vmatpush.msra.mxu0 %v420
    %676 = vmatpush.msra.mxu0 %v416
    %677 = vmatpush.msra.mxu0 %v412
    %678 = vmatpush.msra.mxu0 %v408
    %679 = vmatpush.msra.mxu0 %v404
    %680 = vmatpush.msra.mxu0 %v400
    %681 = vmatpush.msra.mxu0 %v396
    %682 = vmatpush.msra.mxu0 %v392
    %683 = vmatmul.f32.gmra.mxu0 %v599
    %v684 = vpop.f32.mrf.mxu0
    %v685 = vadd.f32 0.0, %v684
    %686 = vdwg.mxu0
    %v687 = vadd.f32 %v603, %v625
    %v688 = vadd.f32 %v604, %v645
    %v689 = vadd.f32 %v605, %v665
    %v690 = vadd.f32 %v606, %v685
    %v691 = vxor.u32 %v687, 2147483648
    %v692 = vxor.u32 %v688, 2147483648
    %v693 = vxor.u32 %v689, 2147483648
    %v694 = vmul.f32 %v691, 1.442695
    %v695 = vpow.pop %v694
    %v696 = vmul.f32 %v692, 1.442695
    %v697 = vpow.pop %v696
    %v698 = vmul.f32 %v693, 1.442695
    %v699 = vpow.pop %v698
    %v700 = vadd.f32 %v695, 1.0
    %v701 = vadd.f32 %v697, 1.0
    %v702 = vadd.f32 %v699, 1.0
    %v703 = vrcp.pop %v700
    %v704 = vmul.f32 %v700, %v703
    %v705 = vsub.f32 1.0, %v704
    %v706 = vmul.f32 %v703, %v705
    %v707 = vadd.f32 %v703, %v706
    %vm708 = vweird.f32 %v700
    %vm709 = vweird.f32 %v703
    %vm710 = vmor %vm708, %vm709
    %v711 = vsel %vm710, %v703, %v707
    %v712 = vand.u32 2147483647, %v700
    %vm713 = vcmp.eq.f32.partialorder %v712, 8.507059e+37
    %v714 = vand.u32 %v700, 2147483648
    %v715 = vor.u32 1.1754944e-38, %v714
    %v716 = vsel %vm713, %v715, %v711
    %v717 = vmul.f32 1.0, %v716
    %v718 = vrcp.pop %v701
    %v719 = vmul.f32 %v701, %v718
    %v720 = vsub.f32 1.0, %v719
    %v721 = vmul.f32 %v718, %v720
    %v722 = vadd.f32 %v718, %v721
    %vm723 = vweird.f32 %v701
    %vm724 = vweird.f32 %v718
    %vm725 = vmor %vm723, %vm724
    %v726 = vsel %vm725, %v718, %v722
    %v727 = vand.u32 2147483647, %v701
    %vm728 = vcmp.eq.f32.partialorder %v727, 8.507059e+37
    %v729 = vand.u32 %v701, 2147483648
    %v730 = vor.u32 1.1754944e-38, %v729
    %v731 = vsel %vm728, %v730, %v726
    %v732 = vmul.f32 1.0, %v731
    %v733 = vrcp.pop %v702
    %v734 = vmul.f32 %v702, %v733
    %v735 = vsub.f32 1.0, %v734
    %v736 = vmul.f32 %v733, %v735
    %v737 = vadd.f32 %v733, %v736
    %vm738 = vweird.f32 %v702
    %vm739 = vweird.f32 %v733
    %vm740 = vmor %vm738, %vm739
    %v741 = vsel %vm740, %v733, %v737
    %v742 = vand.u32 2147483647, %v702
    %vm743 = vcmp.eq.f32.partialorder %v742, 8.507059e+37
    %v744 = vand.u32 %v702, 2147483648
    %v745 = vor.u32 1.1754944e-38, %v744
    %v746 = vsel %vm743, %v745, %v741
    %v747 = vmul.f32 1.0, %v746
    %v748 = vtanh.pop %v690
    %v749 = vmul.f32 %v732, %v597
    %v750 = vmul.f32 %v717, %v748
    %v751 = vadd.f32 %v749, %v750
    %v752 = vtanh.pop %v751
    %v753 = vmul.f32 %v747, %v752
    %s754 = smul.u32 2, 4
    %s755 = smul.addr %s754, 8
    %s756 = scalar_lea.vmem [#allocation2], %s755
    %v757 = vld [vmem:[%s756] sm:$0xff]
    %v758 = vld [vmem:[%s756 + $0x8] sm:$0xff]
    %v759 = vld [vmem:[%s756 + $0x10] sm:$0xff]
    %v760 = vld [vmem:[%s756 + $0x18] sm:$0xff]
    %761 = vmatpush.msra.mxu0 %v449
    %762 = vmatpush.msra.mxu0 %v445
    %763 = vmatpush.msra.mxu0 %v441
    %764 = vmatpush.msra.mxu0 %v437
    %765 = vmatpush.msra.mxu0 %v433
    %766 = vmatpush.msra.mxu0 %v429
    %767 = vmatpush.msra.mxu0 %v425
    %768 = vmatpush.msra.mxu0 %v421
    %769 = vmatpush.msra.mxu0 %v417
    %770 = vmatpush.msra.mxu0 %v413
    %771 = vmatpush.msra.mxu0 %v409
    %772 = vmatpush.msra.mxu0 %v405
    %773 = vmatpush.msra.mxu0 %v401
    %774 = vmatpush.msra.mxu0 %v397
    %775 = vmatpush.msra.mxu0 %v393
    %776 = vmatpush.msra.mxu0 %v389
    %777 = vmatmul.f32.gmra.mxu0 %v753
    %v778 = vpop.f32.mrf.mxu0
    %v779 = vadd.f32 0.0, %v778
    %780 = vdwg.mxu0
    %781 = vmatpush.msra.mxu0 %v450
    %782 = vmatpush.msra.mxu0 %v446
    %783 = vmatpush.msra.mxu0 %v442
    %784 = vmatpush.msra.mxu0 %v438
    %785 = vmatpush.msra.mxu0 %v434
    %786 = vmatpush.msra.mxu0 %v430
    %787 = vmatpush.msra.mxu0 %v426
    %788 = vmatpush.msra.mxu0 %v422
    %789 = vmatpush.msra.mxu0 %v418
    %790 = vmatpush.msra.mxu0 %v414
    %791 = vmatpush.msra.mxu0 %v410
    %792 = vmatpush.msra.mxu0 %v406
    %793 = vmatpush.msra.mxu0 %v402
    %794 = vmatpush.msra.mxu0 %v398
    %795 = vmatpush.msra.mxu0 %v394
    %796 = vmatpush.msra.mxu0 %v390
    %797 = vmatmul.f32.gmra.mxu0 %v753
    %v798 = vpop.f32.mrf.mxu0
    %v799 = vadd.f32 0.0, %v798
    %800 = vdwg.mxu0
    %801 = vmatpush.msra.mxu0 %v451
    %802 = vmatpush.msra.mxu0 %v447
    %803 = vmatpush.msra.mxu0 %v443
    %804 = vmatpush.msra.mxu0 %v439
    %805 = vmatpush.msra.mxu0 %v435
    %806 = vmatpush.msra.mxu0 %v431
    %807 = vmatpush.msra.mxu0 %v427
    %808 = vmatpush.msra.mxu0 %v423
    %809 = vmatpush.msra.mxu0 %v419
    %810 = vmatpush.msra.mxu0 %v415
    %811 = vmatpush.msra.mxu0 %v411
    %812 = vmatpush.msra.mxu0 %v407
    %813 = vmatpush.msra.mxu0 %v403
    %814 = vmatpush.msra.mxu0 %v399
    %815 = vmatpush.msra.mxu0 %v395
    %816 = vmatpush.msra.mxu0 %v391
    %817 = vmatmul.f32.gmra.mxu0 %v753
    %v818 = vpop.f32.mrf.mxu0
    %v819 = vadd.f32 0.0, %v818
    %820 = vdwg.mxu0
    %821 = vmatpush.msra.mxu0 %v452
    %822 = vmatpush.msra.mxu0 %v448
    %823 = vmatpush.msra.mxu0 %v444
    %824 = vmatpush.msra.mxu0 %v440
    %825 = vmatpush.msra.mxu0 %v436
    %826 = vmatpush.msra.mxu0 %v432
    %827 = vmatpush.msra.mxu0 %v428
    %828 = vmatpush.msra.mxu0 %v424
    %829 = vmatpush.msra.mxu0 %v420
    %830 = vmatpush.msra.mxu0 %v416
    %831 = vmatpush.msra.mxu0 %v412
    %832 = vmatpush.msra.mxu0 %v408
    %833 = vmatpush.msra.mxu0 %v404
    %834 = vmatpush.msra.mxu0 %v400
    %835 = vmatpush.msra.mxu0 %v396
    %836 = vmatpush.msra.mxu0 %v392
    %837 = vmatmul.f32.gmra.mxu0 %v753
    %v838 = vpop.f32.mrf.mxu0
    %v839 = vadd.f32 0.0, %v838
    %840 = vdwg.mxu0
    %v841 = vadd.f32 %v757, %v779
    %v842 = vadd.f32 %v758, %v799
    %v843 = vadd.f32 %v759, %v819
    %v844 = vadd.f32 %v760, %v839
    %v845 = vxor.u32 %v841, 2147483648
    %v846 = vxor.u32 %v842, 2147483648
    %v847 = vxor.u32 %v843, 2147483648
    %v848 = vmul.f32 %v845, 1.442695
    %v849 = vpow.pop %v848
    %v850 = vmul.f32 %v846, 1.442695
    %v851 = vpow.pop %v850
    %v852 = vmul.f32 %v847, 1.442695
    %v853 = vpow.pop %v852
    %v854 = vadd.f32 %v849, 1.0
    %v855 = vadd.f32 %v851, 1.0
    %v856 = vadd.f32 %v853, 1.0
    %v857 = vrcp.pop %v854
    %v858 = vmul.f32 %v854, %v857
    %v859 = vsub.f32 1.0, %v858
    %v860 = vmul.f32 %v857, %v859
    %v861 = vadd.f32 %v857, %v860
    %vm862 = vweird.f32 %v854
    %vm863 = vweird.f32 %v857
    %vm864 = vmor %vm862, %vm863
    %v865 = vsel %vm864, %v857, %v861
    %v866 = vand.u32 2147483647, %v854
    %vm867 = vcmp.eq.f32.partialorder %v866, 8.507059e+37
    %v868 = vand.u32 %v854, 2147483648
    %v869 = vor.u32 1.1754944e-38, %v868
    %v870 = vsel %vm867, %v869, %v865
    %v871 = vmul.f32 1.0, %v870
    %v872 = vrcp.pop %v855
    %v873 = vmul.f32 %v855, %v872
    %v874 = vsub.f32 1.0, %v873
    %v875 = vmul.f32 %v872, %v874
    %v876 = vadd.f32 %v872, %v875
    %vm877 = vweird.f32 %v855
    %vm878 = vweird.f32 %v872
    %vm879 = vmor %vm877, %vm878
    %v880 = vsel %vm879, %v872, %v876
    %v881 = vand.u32 2147483647, %v855
    %vm882 = vcmp.eq.f32.partialorder %v881, 8.507059e+37
    %v883 = vand.u32 %v855, 2147483648
    %v884 = vor.u32 1.1754944e-38, %v883
    %v885 = vsel %vm882, %v884, %v880
    %v886 = vmul.f32 1.0, %v885
    %v887 = vrcp.pop %v856
    %v888 = vmul.f32 %v856, %v887
    %v889 = vsub.f32 1.0, %v888
    %v890 = vmul.f32 %v887, %v889
    %v891 = vadd.f32 %v887, %v890
    %vm892 = vweird.f32 %v856
    %vm893 = vweird.f32 %v887
    %vm894 = vmor %vm892, %vm893
    %v895 = vsel %vm894, %v887, %v891
    %v896 = vand.u32 2147483647, %v856
    %vm897 = vcmp.eq.f32.partialorder %v896, 8.507059e+37
    %v898 = vand.u32 %v856, 2147483648
    %v899 = vor.u32 1.1754944e-38, %v898
    %v900 = vsel %vm897, %v899, %v895
    %v901 = vmul.f32 1.0, %v900
    %v902 = vtanh.pop %v844
    %v903 = vmul.f32 %v886, %v751
    %v904 = vmul.f32 %v871, %v902
    %v905 = vadd.f32 %v903, %v904
    %v906 = vtanh.pop %v905
    %v907 = vmul.f32 %v901, %v906
    %s908 = smul.u32 3, 4
    %s909 = smul.addr %s908, 8
    %s910 = scalar_lea.vmem [#allocation2], %s909
    %v911 = vld [vmem:[%s910] sm:$0xff]
    %v912 = vld [vmem:[%s910 + $0x8] sm:$0xff]
    %v913 = vld [vmem:[%s910 + $0x10] sm:$0xff]
    %v914 = vld [vmem:[%s910 + $0x18] sm:$0xff]
    %915 = vmatpush.msra.mxu0 %v449
    %916 = vmatpush.msra.mxu0 %v445
    %917 = vmatpush.msra.mxu0 %v441
    %918 = vmatpush.msra.mxu0 %v437
    %919 = vmatpush.msra.mxu0 %v433
    %920 = vmatpush.msra.mxu0 %v429
    %921 = vmatpush.msra.mxu0 %v425
    %922 = vmatpush.msra.mxu0 %v421
    %923 = vmatpush.msra.mxu0 %v417
    %924 = vmatpush.msra.mxu0 %v413
    %925 = vmatpush.msra.mxu0 %v409
    %926 = vmatpush.msra.mxu0 %v405
    %927 = vmatpush.msra.mxu0 %v401
    %928 = vmatpush.msra.mxu0 %v397
    %929 = vmatpush.msra.mxu0 %v393
    %930 = vmatpush.msra.mxu0 %v389
    %931 = vmatmul.f32.gmra.mxu0 %v907
    %v932 = vpop.f32.mrf.mxu0
    %v933 = vadd.f32 0.0, %v932
    %934 = vdwg.mxu0
    %935 = vmatpush.msra.mxu0 %v450
    %936 = vmatpush.msra.mxu0 %v446
    %937 = vmatpush.msra.mxu0 %v442
    %938 = vmatpush.msra.mxu0 %v438
    %939 = vmatpush.msra.mxu0 %v434
    %940 = vmatpush.msra.mxu0 %v430
    %941 = vmatpush.msra.mxu0 %v426
    %942 = vmatpush.msra.mxu0 %v422
    %943 = vmatpush.msra.mxu0 %v418
    %944 = vmatpush.msra.mxu0 %v414
    %945 = vmatpush.msra.mxu0 %v410
    %946 = vmatpush.msra.mxu0 %v406
    %947 = vmatpush.msra.mxu0 %v402
    %948 = vmatpush.msra.mxu0 %v398
    %949 = vmatpush.msra.mxu0 %v394
    %950 = vmatpush.msra.mxu0 %v390
    %951 = vmatmul.f32.gmra.mxu0 %v907
    %v952 = vpop.f32.mrf.mxu0
    %v953 = vadd.f32 0.0, %v952
    %954 = vdwg.mxu0
    %955 = vmatpush.msra.mxu0 %v451
    %956 = vmatpush.msra.mxu0 %v447
    %957 = vmatpush.msra.mxu0 %v443
    %958 = vmatpush.msra.mxu0 %v439
    %959 = vmatpush.msra.mxu0 %v435
    %960 = vmatpush.msra.mxu0 %v431
    %961 = vmatpush.msra.mxu0 %v427
    %962 = vmatpush.msra.mxu0 %v423
    %963 = vmatpush.msra.mxu0 %v419
    %964 = vmatpush.msra.mxu0 %v415
    %965 = vmatpush.msra.mxu0 %v411
    %966 = vmatpush.msra.mxu0 %v407
    %967 = vmatpush.msra.mxu0 %v403
    %968 = vmatpush.msra.mxu0 %v399
    %969 = vmatpush.msra.mxu0 %v395
    %970 = vmatpush.msra.mxu0 %v391
    %971 = vmatmul.f32.gmra.mxu0 %v907
    %v972 = vpop.f32.mrf.mxu0
    %v973 = vadd.f32 0.0, %v972
    %974 = vdwg.mxu0
    %975 = vmatpush.msra.mxu0 %v452
    %976 = vmatpush.msra.mxu0 %v448
    %977 = vmatpush.msra.mxu0 %v444
    %978 = vmatpush.msra.mxu0 %v440
    %979 = vmatpush.msra.mxu0 %v436
    %980 = vmatpush.msra.mxu0 %v432
    %981 = vmatpush.msra.mxu0 %v428
    %982 = vmatpush.msra.mxu0 %v424
    %983 = vmatpush.msra.mxu0 %v420
    %984 = vmatpush.msra.mxu0 %v416
    %985 = vmatpush.msra.mxu0 %v412
    %986 = vmatpush.msra.mxu0 %v408
    %987 = vmatpush.msra.mxu0 %v404
    %988 = vmatpush.msra.mxu0 %v400
    %989 = vmatpush.msra.mxu0 %v396
    %990 = vmatpush.msra.mxu0 %v392
    %991 = vmatmul.f32.gmra.mxu0 %v907
    %v992 = vpop.f32.mrf.mxu0
    %v993 = vadd.f32 0.0, %v992
    %994 = vdwg.mxu0
    %v995 = vadd.f32 %v911, %v933
    %v996 = vadd.f32 %v912, %v953
    %v997 = vadd.f32 %v913, %v973
    %v998 = vadd.f32 %v914, %v993
    %v999 = vxor.u32 %v995, 2147483648
    %v1000 = vxor.u32 %v996, 2147483648
    %v1001 = vxor.u32 %v997, 2147483648
    %v1002 = vmul.f32 %v999, 1.442695
    %v1003 = vpow.pop %v1002
    %v1004 = vmul.f32 %v1000, 1.442695
    %v1005 = vpow.pop %v1004
    %v1006 = vmul.f32 %v1001, 1.442695
    %v1007 = vpow.pop %v1006
    %v1008 = vadd.f32 %v1003, 1.0
    %v1009 = vadd.f32 %v1005, 1.0
    %v1010 = vadd.f32 %v1007, 1.0
    %v1011 = vrcp.pop %v1008
    %v1012 = vmul.f32 %v1008, %v1011
    %v1013 = vsub.f32 1.0, %v1012
    %v1014 = vmul.f32 %v1011, %v1013
    %v1015 = vadd.f32 %v1011, %v1014
    %vm1016 = vweird.f32 %v1008
    %vm1017 = vweird.f32 %v1011
    %vm1018 = vmor %vm1016, %vm1017
    %v1019 = vsel %vm1018, %v1011, %v1015
    %v1020 = vand.u32 2147483647, %v1008
    %vm1021 = vcmp.eq.f32.partialorder %v1020, 8.507059e+37
    %v1022 = vand.u32 %v1008, 2147483648
    %v1023 = vor.u32 1.1754944e-38, %v1022
    %v1024 = vsel %vm1021, %v1023, %v1019
    %v1025 = vmul.f32 1.0, %v1024
    %v1026 = vrcp.pop %v1009
    %v1027 = vmul.f32 %v1009, %v1026
    %v1028 = vsub.f32 1.0, %v1027
    %v1029 = vmul.f32 %v1026, %v1028
    %v1030 = vadd.f32 %v1026, %v1029
    %vm1031 = vweird.f32 %v1009
    %vm1032 = vweird.f32 %v1026
    %vm1033 = vmor %vm1031, %vm1032
    %v1034 = vsel %vm1033, %v1026, %v1030
    %v1035 = vand.u32 2147483647, %v1009
    %vm1036 = vcmp.eq.f32.partialorder %v1035, 8.507059e+37
    %v1037 = vand.u32 %v1009, 2147483648
    %v1038 = vor.u32 1.1754944e-38, %v1037
    %v1039 = vsel %vm1036, %v1038, %v1034
    %v1040 = vmul.f32 1.0, %v1039
    %v1041 = vrcp.pop %v1010
    %v1042 = vmul.f32 %v1010, %v1041
    %v1043 = vsub.f32 1.0, %v1042
    %v1044 = vmul.f32 %v1041, %v1043
    %v1045 = vadd.f32 %v1041, %v1044
    %vm1046 = vweird.f32 %v1010
    %vm1047 = vweird.f32 %v1041
    %vm1048 = vmor %vm1046, %vm1047
    %v1049 = vsel %vm1048, %v1041, %v1045
    %v1050 = vand.u32 2147483647, %v1010
    %vm1051 = vcmp.eq.f32.partialorder %v1050, 8.507059e+37
    %v1052 = vand.u32 %v1010, 2147483648
    %v1053 = vor.u32 1.1754944e-38, %v1052
    %v1054 = vsel %vm1051, %v1053, %v1049
    %v1055 = vmul.f32 1.0, %v1054
    %v1056 = vtanh.pop %v998
    %v1057 = vmul.f32 %v1040, %v905
    %v1058 = vmul.f32 %v1025, %v1056
    %v1059 = vadd.f32 %v1057, %v1058
    %v1060 = vtanh.pop %v1059
    %v1061 = vmul.f32 %v1055, %v1060
    %s1062 = smul.u32 4, 4
    %s1063 = smul.addr %s1062, 8
    %s1064 = scalar_lea.vmem [#allocation2], %s1063
    %v1065 = vld [vmem:[%s1064] sm:$0xff]
    %v1066 = vld [vmem:[%s1064 + $0x8] sm:$0xff]
    %v1067 = vld [vmem:[%s1064 + $0x10] sm:$0xff]
    %v1068 = vld [vmem:[%s1064 + $0x18] sm:$0xff]
    %1069 = vmatpush.msra.mxu0 %v449
    %1070 = vmatpush.msra.mxu0 %v445
    %1071 = vmatpush.msra.mxu0 %v441
    %1072 = vmatpush.msra.mxu0 %v437
    %1073 = vmatpush.msra.mxu0 %v433
    %1074 = vmatpush.msra.mxu0 %v429
    %1075 = vmatpush.msra.mxu0 %v425
    %1076 = vmatpush.msra.mxu0 %v421
    %1077 = vmatpush.msra.mxu0 %v417
    %1078 = vmatpush.msra.mxu0 %v413
    %1079 = vmatpush.msra.mxu0 %v409
    %1080 = vmatpush.msra.mxu0 %v405
    %1081 = vmatpush.msra.mxu0 %v401
    %1082 = vmatpush.msra.mxu0 %v397
    %1083 = vmatpush.msra.mxu0 %v393
    %1084 = vmatpush.msra.mxu0 %v389
    %1085 = vmatmul.f32.gmra.mxu0 %v1061
    %v1086 = vpop.f32.mrf.mxu0
    %v1087 = vadd.f32 0.0, %v1086
    %1088 = vdwg.mxu0
    %1089 = vmatpush.msra.mxu0 %v450
    %1090 = vmatpush.msra.mxu0 %v446
    %1091 = vmatpush.msra.mxu0 %v442
    %1092 = vmatpush.msra.mxu0 %v438
    %1093 = vmatpush.msra.mxu0 %v434
    %1094 = vmatpush.msra.mxu0 %v430
    %1095 = vmatpush.msra.mxu0 %v426
    %1096 = vmatpush.msra.mxu0 %v422
    %1097 = vmatpush.msra.mxu0 %v418
    %1098 = vmatpush.msra.mxu0 %v414
    %1099 = vmatpush.msra.mxu0 %v410
    %1100 = vmatpush.msra.mxu0 %v406
    %1101 = vmatpush.msra.mxu0 %v402
    %1102 = vmatpush.msra.mxu0 %v398
    %1103 = vmatpush.msra.mxu0 %v394
    %1104 = vmatpush.msra.mxu0 %v390
    %1105 = vmatmul.f32.gmra.mxu0 %v1061
    %v1106 = vpop.f32.mrf.mxu0
    %v1107 = vadd.f32 0.0, %v1106
    %1108 = vdwg.mxu0
    %1109 = vmatpush.msra.mxu0 %v451
    %1110 = vmatpush.msra.mxu0 %v447
    %1111 = vmatpush.msra.mxu0 %v443
    %1112 = vmatpush.msra.mxu0 %v439
    %1113 = vmatpush.msra.mxu0 %v435
    %1114 = vmatpush.msra.mxu0 %v431
    %1115 = vmatpush.msra.mxu0 %v427
    %1116 = vmatpush.msra.mxu0 %v423
    %1117 = vmatpush.msra.mxu0 %v419
    %1118 = vmatpush.msra.mxu0 %v415
    %1119 = vmatpush.msra.mxu0 %v411
    %1120 = vmatpush.msra.mxu0 %v407
    %1121 = vmatpush.msra.mxu0 %v403
    %1122 = vmatpush.msra.mxu0 %v399
    %1123 = vmatpush.msra.mxu0 %v395
    %1124 = vmatpush.msra.mxu0 %v391
    %1125 = vmatmul.f32.gmra.mxu0 %v1061
    %v1126 = vpop.f32.mrf.mxu0
    %v1127 = vadd.f32 0.0, %v1126
    %1128 = vdwg.mxu0
    %1129 = vmatpush.msra.mxu0 %v452
    %1130 = vmatpush.msra.mxu0 %v448
    %1131 = vmatpush.msra.mxu0 %v444
    %1132 = vmatpush.msra.mxu0 %v440
    %1133 = vmatpush.msra.mxu0 %v436
    %1134 = vmatpush.msra.mxu0 %v432
    %1135 = vmatpush.msra.mxu0 %v428
    %1136 = vmatpush.msra.mxu0 %v424
    %1137 = vmatpush.msra.mxu0 %v420
    %1138 = vmatpush.msra.mxu0 %v416
    %1139 = vmatpush.msra.mxu0 %v412
    %1140 = vmatpush.msra.mxu0 %v408
    %1141 = vmatpush.msra.mxu0 %v404
    %1142 = vmatpush.msra.mxu0 %v400
    %1143 = vmatpush.msra.mxu0 %v396
    %1144 = vmatpush.msra.mxu0 %v392
    %1145 = vmatmul.f32.gmra.mxu0 %v1061
    %v1146 = vpop.f32.mrf.mxu0
    %v1147 = vadd.f32 0.0, %v1146
    %1148 = vdwg.mxu0
    %v1149 = vadd.f32 %v1065, %v1087
    %v1150 = vadd.f32 %v1066, %v1107
    %v1151 = vadd.f32 %v1067, %v1127
    %v1152 = vadd.f32 %v1068, %v1147
    %v1153 = vxor.u32 %v1149, 2147483648
    %v1154 = vxor.u32 %v1150, 2147483648
    %v1155 = vxor.u32 %v1151, 2147483648
    %v1156 = vmul.f32 %v1153, 1.442695
    %v1157 = vpow.pop %v1156
    %v1158 = vmul.f32 %v1154, 1.442695
    %v1159 = vpow.pop %v1158
    %v1160 = vmul.f32 %v1155, 1.442695
    %v1161 = vpow.pop %v1160
    %v1162 = vadd.f32 %v1157, 1.0
    %v1163 = vadd.f32 %v1159, 1.0
    %v1164 = vadd.f32 %v1161, 1.0
    %v1165 = vrcp.pop %v1162
    %v1166 = vmul.f32 %v1162, %v1165
    %v1167 = vsub.f32 1.0, %v1166
    %v1168 = vmul.f32 %v1165, %v1167
    %v1169 = vadd.f32 %v1165, %v1168
    %vm1170 = vweird.f32 %v1162
    %vm1171 = vweird.f32 %v1165
    %vm1172 = vmor %vm1170, %vm1171
    %v1173 = vsel %vm1172, %v1165, %v1169
    %v1174 = vand.u32 2147483647, %v1162
    %vm1175 = vcmp.eq.f32.partialorder %v1174, 8.507059e+37
    %v1176 = vand.u32 %v1162, 2147483648
    %v1177 = vor.u32 1.1754944e-38, %v1176
    %v1178 = vsel %vm1175, %v1177, %v1173
    %v1179 = vmul.f32 1.0, %v1178
    %v1180 = vrcp.pop %v1163
    %v1181 = vmul.f32 %v1163, %v1180
    %v1182 = vsub.f32 1.0, %v1181
    %v1183 = vmul.f32 %v1180, %v1182
    %v1184 = vadd.f32 %v1180, %v1183
    %vm1185 = vweird.f32 %v1163
    %vm1186 = vweird.f32 %v1180
    %vm1187 = vmor %vm1185, %vm1186
    %v1188 = vsel %vm1187, %v1180, %v1184
    %v1189 = vand.u32 2147483647, %v1163
    %vm1190 = vcmp.eq.f32.partialorder %v1189, 8.507059e+37
    %v1191 = vand.u32 %v1163, 2147483648
    %v1192 = vor.u32 1.1754944e-38, %v1191
    %v1193 = vsel %vm1190, %v1192, %v1188
    %v1194 = vmul.f32 1.0, %v1193
    %v1195 = vrcp.pop %v1164
    %v1196 = vmul.f32 %v1164, %v1195
    %v1197 = vsub.f32 1.0, %v1196
    %v1198 = vmul.f32 %v1195, %v1197
    %v1199 = vadd.f32 %v1195, %v1198
    %vm1200 = vweird.f32 %v1164
    %vm1201 = vweird.f32 %v1195
    %vm1202 = vmor %vm1200, %vm1201
    %v1203 = vsel %vm1202, %v1195, %v1199
    %v1204 = vand.u32 2147483647, %v1164
    %vm1205 = vcmp.eq.f32.partialorder %v1204, 8.507059e+37
    %v1206 = vand.u32 %v1164, 2147483648
    %v1207 = vor.u32 1.1754944e-38, %v1206
    %v1208 = vsel %vm1205, %v1207, %v1203
    %v1209 = vmul.f32 1.0, %v1208
    %v1210 = vtanh.pop %v1152
    %v1211 = vmul.f32 %v1194, %v1059
    %v1212 = vmul.f32 %v1179, %v1210
    %v1213 = vadd.f32 %v1211, %v1212
    %v1214 = vtanh.pop %v1213
    %v1215 = vmul.f32 %v1209, %v1214
    %s1216 = smul.u32 5, 4
    %s1217 = smul.addr %s1216, 8
    %s1218 = scalar_lea.vmem [#allocation2], %s1217
    %v1219 = vld [vmem:[%s1218] sm:$0xff]
    %v1220 = vld [vmem:[%s1218 + $0x8] sm:$0xff]
    %v1221 = vld [vmem:[%s1218 + $0x10] sm:$0xff]
    %v1222 = vld [vmem:[%s1218 + $0x18] sm:$0xff]
    %1223 = vmatpush.msra.mxu0 %v449
    %1224 = vmatpush.msra.mxu0 %v445
    %1225 = vmatpush.msra.mxu0 %v441
    %1226 = vmatpush.msra.mxu0 %v437
    %1227 = vmatpush.msra.mxu0 %v433
    %1228 = vmatpush.msra.mxu0 %v429
    %1229 = vmatpush.msra.mxu0 %v425
    %1230 = vmatpush.msra.mxu0 %v421
    %1231 = vmatpush.msra.mxu0 %v417
    %1232 = vmatpush.msra.mxu0 %v413
    %1233 = vmatpush.msra.mxu0 %v409
    %1234 = vmatpush.msra.mxu0 %v405
    %1235 = vmatpush.msra.mxu0 %v401
    %1236 = vmatpush.msra.mxu0 %v397
    %1237 = vmatpush.msra.mxu0 %v393
    %1238 = vmatpush.msra.mxu0 %v389
    %1239 = vmatmul.f32.gmra.mxu0 %v1215
    %v1240 = vpop.f32.mrf.mxu0
    %v1241 = vadd.f32 0.0, %v1240
    %1242 = vdwg.mxu0
    %1243 = vmatpush.msra.mxu0 %v450
    %1244 = vmatpush.msra.mxu0 %v446
    %1245 = vmatpush.msra.mxu0 %v442
    %1246 = vmatpush.msra.mxu0 %v438
    %1247 = vmatpush.msra.mxu0 %v434
    %1248 = vmatpush.msra.mxu0 %v430
    %1249 = vmatpush.msra.mxu0 %v426
    %1250 = vmatpush.msra.mxu0 %v422
    %1251 = vmatpush.msra.mxu0 %v418
    %1252 = vmatpush.msra.mxu0 %v414
    %1253 = vmatpush.msra.mxu0 %v410
    %1254 = vmatpush.msra.mxu0 %v406
    %1255 = vmatpush.msra.mxu0 %v402
    %1256 = vmatpush.msra.mxu0 %v398
    %1257 = vmatpush.msra.mxu0 %v394
    %1258 = vmatpush.msra.mxu0 %v390
    %1259 = vmatmul.f32.gmra.mxu0 %v1215
    %v1260 = vpop.f32.mrf.mxu0
    %v1261 = vadd.f32 0.0, %v1260
    %1262 = vdwg.mxu0
    %1263 = vmatpush.msra.mxu0 %v451
    %1264 = vmatpush.msra.mxu0 %v447
    %1265 = vmatpush.msra.mxu0 %v443
    %1266 = vmatpush.msra.mxu0 %v439
    %1267 = vmatpush.msra.mxu0 %v435
    %1268 = vmatpush.msra.mxu0 %v431
    %1269 = vmatpush.msra.mxu0 %v427
    %1270 = vmatpush.msra.mxu0 %v423
    %1271 = vmatpush.msra.mxu0 %v419
    %1272 = vmatpush.msra.mxu0 %v415
    %1273 = vmatpush.msra.mxu0 %v411
    %1274 = vmatpush.msra.mxu0 %v407
    %1275 = vmatpush.msra.mxu0 %v403
    %1276 = vmatpush.msra.mxu0 %v399
    %1277 = vmatpush.msra.mxu0 %v395
    %1278 = vmatpush.msra.mxu0 %v391
    %1279 = vmatmul.f32.gmra.mxu0 %v1215
    %v1280 = vpop.f32.mrf.mxu0
    %v1281 = vadd.f32 0.0, %v1280
    %1282 = vdwg.mxu0
    %1283 = vmatpush.msra.mxu0 %v452
    %1284 = vmatpush.msra.mxu0 %v448
    %1285 = vmatpush.msra.mxu0 %v444
    %1286 = vmatpush.msra.mxu0 %v440
    %1287 = vmatpush.msra.mxu0 %v436
    %1288 = vmatpush.msra.mxu0 %v432
    %1289 = vmatpush.msra.mxu0 %v428
    %1290 = vmatpush.msra.mxu0 %v424
    %1291 = vmatpush.msra.mxu0 %v420
    %1292 = vmatpush.msra.mxu0 %v416
    %1293 = vmatpush.msra.mxu0 %v412
    %1294 = vmatpush.msra.mxu0 %v408
    %1295 = vmatpush.msra.mxu0 %v404
    %1296 = vmatpush.msra.mxu0 %v400
    %1297 = vmatpush.msra.mxu0 %v396
    %1298 = vmatpush.msra.mxu0 %v392
    %1299 = vmatmul.f32.gmra.mxu0 %v1215
    %v1300 = vpop.f32.mrf.mxu0
    %v1301 = vadd.f32 0.0, %v1300
    %1302 = vdwg.mxu0
    %v1303 = vadd.f32 %v1219, %v1241
    %v1304 = vadd.f32 %v1220, %v1261
    %v1305 = vadd.f32 %v1221, %v1281
    %v1306 = vadd.f32 %v1222, %v1301
    %v1307 = vxor.u32 %v1303, 2147483648
    %v1308 = vxor.u32 %v1304, 2147483648
    %v1309 = vxor.u32 %v1305, 2147483648
    %v1310 = vmul.f32 %v1307, 1.442695
    %v1311 = vpow.pop %v1310
    %v1312 = vmul.f32 %v1308, 1.442695
    %v1313 = vpow.pop %v1312
    %v1314 = vmul.f32 %v1309, 1.442695
    %v1315 = vpow.pop %v1314
    %v1316 = vadd.f32 %v1311, 1.0
    %v1317 = vadd.f32 %v1313, 1.0
    %v1318 = vadd.f32 %v1315, 1.0
    %v1319 = vrcp.pop %v1316
    %v1320 = vmul.f32 %v1316, %v1319
    %v1321 = vsub.f32 1.0, %v1320
    %v1322 = vmul.f32 %v1319, %v1321
    %v1323 = vadd.f32 %v1319, %v1322
    %vm1324 = vweird.f32 %v1316
    %vm1325 = vweird.f32 %v1319
    %vm1326 = vmor %vm1324, %vm1325
    %v1327 = vsel %vm1326, %v1319, %v1323
    %v1328 = vand.u32 2147483647, %v1316
    %vm1329 = vcmp.eq.f32.partialorder %v1328, 8.507059e+37
    %v1330 = vand.u32 %v1316, 2147483648
    %v1331 = vor.u32 1.1754944e-38, %v1330
    %v1332 = vsel %vm1329, %v1331, %v1327
    %v1333 = vmul.f32 1.0, %v1332
    %v1334 = vrcp.pop %v1317
    %v1335 = vmul.f32 %v1317, %v1334
    %v1336 = vsub.f32 1.0, %v1335
    %v1337 = vmul.f32 %v1334, %v1336
    %v1338 = vadd.f32 %v1334, %v1337
    %vm1339 = vweird.f32 %v1317
    %vm1340 = vweird.f32 %v1334
    %vm1341 = vmor %vm1339, %vm1340
    %v1342 = vsel %vm1341, %v1334, %v1338
    %v1343 = vand.u32 2147483647, %v1317
    %vm1344 = vcmp.eq.f32.partialorder %v1343, 8.507059e+37
    %v1345 = vand.u32 %v1317, 2147483648
    %v1346 = vor.u32 1.1754944e-38, %v1345
    %v1347 = vsel %vm1344, %v1346, %v1342
    %v1348 = vmul.f32 1.0, %v1347
    %v1349 = vrcp.pop %v1318
    %v1350 = vmul.f32 %v1318, %v1349
    %v1351 = vsub.f32 1.0, %v1350
    %v1352 = vmul.f32 %v1349, %v1351
    %v1353 = vadd.f32 %v1349, %v1352
    %vm1354 = vweird.f32 %v1318
    %vm1355 = vweird.f32 %v1349
    %vm1356 = vmor %vm1354, %vm1355
    %v1357 = vsel %vm1356, %v1349, %v1353
    %v1358 = vand.u32 2147483647, %v1318
    %vm1359 = vcmp.eq.f32.partialorder %v1358, 8.507059e+37
    %v1360 = vand.u32 %v1318, 2147483648
    %v1361 = vor.u32 1.1754944e-38, %v1360
    %v1362 = vsel %vm1359, %v1361, %v1357
    %v1363 = vmul.f32 1.0, %v1362
    %v1364 = vtanh.pop %v1306
    %v1365 = vmul.f32 %v1348, %v1213
    %v1366 = vmul.f32 %v1333, %v1364
    %v1367 = vadd.f32 %v1365, %v1366
    %v1368 = vtanh.pop %v1367
    %v1369 = vmul.f32 %v1363, %v1368
    %s1370 = smul.u32 6, 4
    %s1371 = smul.addr %s1370, 8
    %s1372 = scalar_lea.vmem [#allocation2], %s1371
    %v1373 = vld [vmem:[%s1372] sm:$0xff]
    %v1374 = vld [vmem:[%s1372 + $0x8] sm:$0xff]
    %v1375 = vld [vmem:[%s1372 + $0x10] sm:$0xff]
    %v1376 = vld [vmem:[%s1372 + $0x18] sm:$0xff]
    %1377 = vmatpush.msra.mxu0 %v449
    %1378 = vmatpush.msra.mxu0 %v445
    %1379 = vmatpush.msra.mxu0 %v441
    %1380 = vmatpush.msra.mxu0 %v437
    %1381 = vmatpush.msra.mxu0 %v433
    %1382 = vmatpush.msra.mxu0 %v429
    %1383 = vmatpush.msra.mxu0 %v425
    %1384 = vmatpush.msra.mxu0 %v421
    %1385 = vmatpush.msra.mxu0 %v417
    %1386 = vmatpush.msra.mxu0 %v413
    %1387 = vmatpush.msra.mxu0 %v409
    %1388 = vmatpush.msra.mxu0 %v405
    %1389 = vmatpush.msra.mxu0 %v401
    %1390 = vmatpush.msra.mxu0 %v397
    %1391 = vmatpush.msra.mxu0 %v393
    %1392 = vmatpush.msra.mxu0 %v389
    %1393 = vmatmul.f32.gmra.mxu0 %v1369
    %v1394 = vpop.f32.mrf.mxu0
    %v1395 = vadd.f32 0.0, %v1394
    %1396 = vdwg.mxu0
    %1397 = vmatpush.msra.mxu0 %v450
    %1398 = vmatpush.msra.mxu0 %v446
    %1399 = vmatpush.msra.mxu0 %v442
    %1400 = vmatpush.msra.mxu0 %v438
    %1401 = vmatpush.msra.mxu0 %v434
    %1402 = vmatpush.msra.mxu0 %v430
    %1403 = vmatpush.msra.mxu0 %v426
    %1404 = vmatpush.msra.mxu0 %v422
    %1405 = vmatpush.msra.mxu0 %v418
    %1406 = vmatpush.msra.mxu0 %v414
    %1407 = vmatpush.msra.mxu0 %v410
    %1408 = vmatpush.msra.mxu0 %v406
    %1409 = vmatpush.msra.mxu0 %v402
    %1410 = vmatpush.msra.mxu0 %v398
    %1411 = vmatpush.msra.mxu0 %v394
    %1412 = vmatpush.msra.mxu0 %v390
    %1413 = vmatmul.f32.gmra.mxu0 %v1369
    %v1414 = vpop.f32.mrf.mxu0
    %v1415 = vadd.f32 0.0, %v1414
    %1416 = vdwg.mxu0
    %1417 = vmatpush.msra.mxu0 %v451
    %1418 = vmatpush.msra.mxu0 %v447
    %1419 = vmatpush.msra.mxu0 %v443
    %1420 = vmatpush.msra.mxu0 %v439
    %1421 = vmatpush.msra.mxu0 %v435
    %1422 = vmatpush.msra.mxu0 %v431
    %1423 = vmatpush.msra.mxu0 %v427
    %1424 = vmatpush.msra.mxu0 %v423
    %1425 = vmatpush.msra.mxu0 %v419
    %1426 = vmatpush.msra.mxu0 %v415
    %1427 = vmatpush.msra.mxu0 %v411
    %1428 = vmatpush.msra.mxu0 %v407
    %1429 = vmatpush.msra.mxu0 %v403
    %1430 = vmatpush.msra.mxu0 %v399
    %1431 = vmatpush.msra.mxu0 %v395
    %1432 = vmatpush.msra.mxu0 %v391
    %1433 = vmatmul.f32.gmra.mxu0 %v1369
    %v1434 = vpop.f32.mrf.mxu0
    %v1435 = vadd.f32 0.0, %v1434
    %1436 = vdwg.mxu0
    %1437 = vmatpush.msra.mxu0 %v452
    %1438 = vmatpush.msra.mxu0 %v448
    %1439 = vmatpush.msra.mxu0 %v444
    %1440 = vmatpush.msra.mxu0 %v440
    %1441 = vmatpush.msra.mxu0 %v436
    %1442 = vmatpush.msra.mxu0 %v432
    %1443 = vmatpush.msra.mxu0 %v428
    %1444 = vmatpush.msra.mxu0 %v424
    %1445 = vmatpush.msra.mxu0 %v420
    %1446 = vmatpush.msra.mxu0 %v416
    %1447 = vmatpush.msra.mxu0 %v412
    %1448 = vmatpush.msra.mxu0 %v408
    %1449 = vmatpush.msra.mxu0 %v404
    %1450 = vmatpush.msra.mxu0 %v400
    %1451 = vmatpush.msra.mxu0 %v396
    %1452 = vmatpush.msra.mxu0 %v392
    %1453 = vmatmul.f32.gmra.mxu0 %v1369
    %v1454 = vpop.f32.mrf.mxu0
    %v1455 = vadd.f32 0.0, %v1454
    %1456 = vdwg.mxu0
    %v1457 = vadd.f32 %v1373, %v1395
    %v1458 = vadd.f32 %v1374, %v1415
    %v1459 = vadd.f32 %v1375, %v1435
    %v1460 = vadd.f32 %v1376, %v1455
    %v1461 = vxor.u32 %v1457, 2147483648
    %v1462 = vxor.u32 %v1458, 2147483648
    %v1463 = vxor.u32 %v1459, 2147483648
    %v1464 = vmul.f32 %v1461, 1.442695
    %v1465 = vpow.pop %v1464
    %v1466 = vmul.f32 %v1462, 1.442695
    %v1467 = vpow.pop %v1466
    %v1468 = vmul.f32 %v1463, 1.442695
    %v1469 = vpow.pop %v1468
    %v1470 = vadd.f32 %v1465, 1.0
    %v1471 = vadd.f32 %v1467, 1.0
    %v1472 = vadd.f32 %v1469, 1.0
    %v1473 = vrcp.pop %v1470
    %v1474 = vmul.f32 %v1470, %v1473
    %v1475 = vsub.f32 1.0, %v1474
    %v1476 = vmul.f32 %v1473, %v1475
    %v1477 = vadd.f32 %v1473, %v1476
    %vm1478 = vweird.f32 %v1470
    %vm1479 = vweird.f32 %v1473
    %vm1480 = vmor %vm1478, %vm1479
    %v1481 = vsel %vm1480, %v1473, %v1477
    %v1482 = vand.u32 2147483647, %v1470
    %vm1483 = vcmp.eq.f32.partialorder %v1482, 8.507059e+37
    %v1484 = vand.u32 %v1470, 2147483648
    %v1485 = vor.u32 1.1754944e-38, %v1484
    %v1486 = vsel %vm1483, %v1485, %v1481
    %v1487 = vmul.f32 1.0, %v1486
    %v1488 = vrcp.pop %v1471
    %v1489 = vmul.f32 %v1471, %v1488
    %v1490 = vsub.f32 1.0, %v1489
    %v1491 = vmul.f32 %v1488, %v1490
    %v1492 = vadd.f32 %v1488, %v1491
    %vm1493 = vweird.f32 %v1471
    %vm1494 = vweird.f32 %v1488
    %vm1495 = vmor %vm1493, %vm1494
    %v1496 = vsel %vm1495, %v1488, %v1492
    %v1497 = vand.u32 2147483647, %v1471
    %vm1498 = vcmp.eq.f32.partialorder %v1497, 8.507059e+37
    %v1499 = vand.u32 %v1471, 2147483648
    %v1500 = vor.u32 1.1754944e-38, %v1499
    %v1501 = vsel %vm1498, %v1500, %v1496
    %v1502 = vmul.f32 1.0, %v1501
    %v1503 = vrcp.pop %v1472
    %v1504 = vmul.f32 %v1472, %v1503
    %v1505 = vsub.f32 1.0, %v1504
    %v1506 = vmul.f32 %v1503, %v1505
    %v1507 = vadd.f32 %v1503, %v1506
    %vm1508 = vweird.f32 %v1472
    %vm1509 = vweird.f32 %v1503
    %vm1510 = vmor %vm1508, %vm1509
    %v1511 = vsel %vm1510, %v1503, %v1507
    %v1512 = vand.u32 2147483647, %v1472
    %vm1513 = vcmp.eq.f32.partialorder %v1512, 8.507059e+37
    %v1514 = vand.u32 %v1472, 2147483648
    %v1515 = vor.u32 1.1754944e-38, %v1514
    %v1516 = vsel %vm1513, %v1515, %v1511
    %v1517 = vmul.f32 1.0, %v1516
    %v1518 = vtanh.pop %v1460
    %v1519 = vmul.f32 %v1502, %v1367
    %v1520 = vmul.f32 %v1487, %v1518
    %v1521 = vadd.f32 %v1519, %v1520
    %v1522 = vtanh.pop %v1521
    %v1523 = vmul.f32 %v1517, %v1522
    %s1524 = smul.u32 7, 4
    %s1525 = smul.addr %s1524, 8
    %s1526 = scalar_lea.vmem [#allocation2], %s1525
    %v1527 = vld [vmem:[%s1526] sm:$0xff]
    %v1528 = vld [vmem:[%s1526 + $0x8] sm:$0xff]
    %v1529 = vld [vmem:[%s1526 + $0x10] sm:$0xff]
    %v1530 = vld [vmem:[%s1526 + $0x18] sm:$0xff]
    %1531 = vmatpush.msra.mxu0 %v449
    %1532 = vmatpush.msra.mxu0 %v445
    %1533 = vmatpush.msra.mxu0 %v441
    %1534 = vmatpush.msra.mxu0 %v437
    %1535 = vmatpush.msra.mxu0 %v433
    %1536 = vmatpush.msra.mxu0 %v429
    %1537 = vmatpush.msra.mxu0 %v425
    %1538 = vmatpush.msra.mxu0 %v421
    %1539 = vmatpush.msra.mxu0 %v417
    %1540 = vmatpush.msra.mxu0 %v413
    %1541 = vmatpush.msra.mxu0 %v409
    %1542 = vmatpush.msra.mxu0 %v405
    %1543 = vmatpush.msra.mxu0 %v401
    %1544 = vmatpush.msra.mxu0 %v397
    %1545 = vmatpush.msra.mxu0 %v393
    %1546 = vmatpush.msra.mxu0 %v389
    %1547 = vmatmul.f32.gmra.mxu0 %v1523
    %v1548 = vpop.f32.mrf.mxu0
    %v1549 = vadd.f32 0.0, %v1548
    %1550 = vdwg.mxu0
    %1551 = vmatpush.msra.mxu0 %v450
    %1552 = vmatpush.msra.mxu0 %v446
    %1553 = vmatpush.msra.mxu0 %v442
    %1554 = vmatpush.msra.mxu0 %v438
    %1555 = vmatpush.msra.mxu0 %v434
    %1556 = vmatpush.msra.mxu0 %v430
    %1557 = vmatpush.msra.mxu0 %v426
    %1558 = vmatpush.msra.mxu0 %v422
    %1559 = vmatpush.msra.mxu0 %v418
    %1560 = vmatpush.msra.mxu0 %v414
    %1561 = vmatpush.msra.mxu0 %v410
    %1562 = vmatpush.msra.mxu0 %v406
    %1563 = vmatpush.msra.mxu0 %v402
    %1564 = vmatpush.msra.mxu0 %v398
    %1565 = vmatpush.msra.mxu0 %v394
    %1566 = vmatpush.msra.mxu0 %v390
    %1567 = vmatmul.f32.gmra.mxu0 %v1523
    %v1568 = vpop.f32.mrf.mxu0
    %v1569 = vadd.f32 0.0, %v1568
    %1570 = vdwg.mxu0
    %1571 = vmatpush.msra.mxu0 %v451
    %1572 = vmatpush.msra.mxu0 %v447
    %1573 = vmatpush.msra.mxu0 %v443
    %1574 = vmatpush.msra.mxu0 %v439
    %1575 = vmatpush.msra.mxu0 %v435
    %1576 = vmatpush.msra.mxu0 %v431
    %1577 = vmatpush.msra.mxu0 %v427
    %1578 = vmatpush.msra.mxu0 %v423
    %1579 = vmatpush.msra.mxu0 %v419
    %1580 = vmatpush.msra.mxu0 %v415
    %1581 = vmatpush.msra.mxu0 %v411
    %1582 = vmatpush.msra.mxu0 %v407
    %1583 = vmatpush.msra.mxu0 %v403
    %1584 = vmatpush.msra.mxu0 %v399
    %1585 = vmatpush.msra.mxu0 %v395
    %1586 = vmatpush.msra.mxu0 %v391
    %1587 = vmatmul.f32.gmra.mxu0 %v1523
    %v1588 = vpop.f32.mrf.mxu0
    %v1589 = vadd.f32 0.0, %v1588
    %1590 = vdwg.mxu0
    %1591 = vmatpush.msra.mxu0 %v452
    %1592 = vmatpush.msra.mxu0 %v448
    %1593 = vmatpush.msra.mxu0 %v444
    %1594 = vmatpush.msra.mxu0 %v440
    %1595 = vmatpush.msra.mxu0 %v436
    %1596 = vmatpush.msra.mxu0 %v432
    %1597 = vmatpush.msra.mxu0 %v428
    %1598 = vmatpush.msra.mxu0 %v424
    %1599 = vmatpush.msra.mxu0 %v420
    %1600 = vmatpush.msra.mxu0 %v416
    %1601 = vmatpush.msra.mxu0 %v412
    %1602 = vmatpush.msra.mxu0 %v408
    %1603 = vmatpush.msra.mxu0 %v404
    %1604 = vmatpush.msra.mxu0 %v400
    %1605 = vmatpush.msra.mxu0 %v396
    %1606 = vmatpush.msra.mxu0 %v392
    %1607 = vmatmul.f32.gmra.mxu0 %v1523
    %v1608 = vpop.f32.mrf.mxu0
    %v1609 = vadd.f32 0.0, %v1608
    %1610 = vdwg.mxu0
    %v1611 = vadd.f32 %v1527, %v1549
    %v1612 = vadd.f32 %v1528, %v1569
    %v1613 = vadd.f32 %v1529, %v1589
    %v1614 = vadd.f32 %v1530, %v1609
    %v1615 = vxor.u32 %v1611, 2147483648
    %v1616 = vxor.u32 %v1612, 2147483648
    %v1617 = vxor.u32 %v1613, 2147483648
    %v1618 = vmul.f32 %v1615, 1.442695
    %v1619 = vpow.pop %v1618
    %v1620 = vmul.f32 %v1616, 1.442695
    %v1621 = vpow.pop %v1620
    %v1622 = vmul.f32 %v1617, 1.442695
    %v1623 = vpow.pop %v1622
    %v1624 = vadd.f32 %v1619, 1.0
    %v1625 = vadd.f32 %v1621, 1.0
    %v1626 = vadd.f32 %v1623, 1.0
    %v1627 = vrcp.pop %v1624
    %v1628 = vmul.f32 %v1624, %v1627
    %v1629 = vsub.f32 1.0, %v1628
    %v1630 = vmul.f32 %v1627, %v1629
    %v1631 = vadd.f32 %v1627, %v1630
    %vm1632 = vweird.f32 %v1624
    %vm1633 = vweird.f32 %v1627
    %vm1634 = vmor %vm1632, %vm1633
    %v1635 = vsel %vm1634, %v1627, %v1631
    %v1636 = vand.u32 2147483647, %v1624
    %vm1637 = vcmp.eq.f32.partialorder %v1636, 8.507059e+37
    %v1638 = vand.u32 %v1624, 2147483648
    %v1639 = vor.u32 1.1754944e-38, %v1638
    %v1640 = vsel %vm1637, %v1639, %v1635
    %v1641 = vmul.f32 1.0, %v1640
    %v1642 = vrcp.pop %v1625
    %v1643 = vmul.f32 %v1625, %v1642
    %v1644 = vsub.f32 1.0, %v1643
    %v1645 = vmul.f32 %v1642, %v1644
    %v1646 = vadd.f32 %v1642, %v1645
    %vm1647 = vweird.f32 %v1625
    %vm1648 = vweird.f32 %v1642
    %vm1649 = vmor %vm1647, %vm1648
    %v1650 = vsel %vm1649, %v1642, %v1646
    %v1651 = vand.u32 2147483647, %v1625
    %vm1652 = vcmp.eq.f32.partialorder %v1651, 8.507059e+37
    %v1653 = vand.u32 %v1625, 2147483648
    %v1654 = vor.u32 1.1754944e-38, %v1653
    %v1655 = vsel %vm1652, %v1654, %v1650
    %v1656 = vmul.f32 1.0, %v1655
    %v1657 = vrcp.pop %v1626
    %v1658 = vmul.f32 %v1626, %v1657
    %v1659 = vsub.f32 1.0, %v1658
    %v1660 = vmul.f32 %v1657, %v1659
    %v1661 = vadd.f32 %v1657, %v1660
    %vm1662 = vweird.f32 %v1626
    %vm1663 = vweird.f32 %v1657
    %vm1664 = vmor %vm1662, %vm1663
    %v1665 = vsel %vm1664, %v1657, %v1661
    %v1666 = vand.u32 2147483647, %v1626
    %vm1667 = vcmp.eq.f32.partialorder %v1666, 8.507059e+37
    %v1668 = vand.u32 %v1626, 2147483648
    %v1669 = vor.u32 1.1754944e-38, %v1668
    %v1670 = vsel %vm1667, %v1669, %v1665
    %v1671 = vmul.f32 1.0, %v1670
    %v1672 = vtanh.pop %v1614
    %v1673 = vmul.f32 %v1656, %v1521
    %v1674 = vmul.f32 %v1641, %v1672
    %v1675 = vadd.f32 %v1673, %v1674
    %v1676 = vtanh.pop %v1675
    %v1677 = vmul.f32 %v1671, %v1676
    %v1678 = vld [vmem:[%s4] sm:$0x1]
    %v1680 = vperm.slane %v1678, 0
    %v1682 = vmul.f32 %v1677, %v1680
    %1683 = vadd.xlane.f32.xlu0 %v1682
    %v1684 = vpop.xlane.xlu0 %1683
    %v1685 = vld [vmem:[#allocation3] sm:$0x1]
    %v1687 = vperm.slane %v1685, 0
    %v1689 = vadd.f32 %v1684, %v1687
    %vm1690 = vcmask 7168
    %1691 = vst.msk [vmem:[%s6] sm:$0xff] %vm1690, %v1689
    // Predicated region
    $region42: #{tpu_custom_call.1} parent=1 // pred_check
      _
    $region43: #{tpu_custom_call.1} parent=1 // pred_check_branch
      %1693 = sbr.rel (0) target = $region45
    $region44: #{tpu_custom_call.1} parent=1 // pred_region
      _
    $region45: #{tpu_custom_call.1} parent=1 // pred_fallthru
      _
    // Predicated region
    $region46: #{tpu_custom_call.1} parent=1 // pred_check
      _
    $region47: #{tpu_custom_call.1} parent=1 // pred_check_branch
      %1695 = sbr.rel (0) target = $region49
    $region48: #{tpu_custom_call.1} parent=1 // pred_region
      _
    $region49: #{tpu_custom_call.1} parent=1 // pred_fallthru
      _
    %1696 = vsyncpa [#allocation5], 1
    %1697 = vsyncpa [#allocation7], 1
    %1698 = vsyncpa [#allocation10], 1

</llo_original>
